<compile_context>
chip_gen: v7x
topology: tpu7x:2x2x1
jax: 0.10.0
libtpu: 0.0.40
codegen_flags: <defaults>
</compile_context>

<pallas_src>
import functools

import jax
import jax.numpy as jnp
from jax.experimental import pallas as pl
from jax.experimental.pallas import tpu as pltpu

LANE = 128


def _round_up(x, m):
    return (x + m - 1) // m * m


def dqn_kernel(x_ref,
               w1_ref, b1_ref,
               w2_ref, b2_ref,
               w3_ref, b3_ref,
               w4_ref, b4_ref,
               w5_ref, b5_ref,
               o_ref):
    def layer(h, w_ref, b_ref, relu):
        # Matmul operands in the weight dtype (bf16 or f32), f32 accumulation.
        h = jnp.dot(h.astype(w_ref.dtype), w_ref[...],
                    preferred_element_type=jnp.float32)
        h = h + b_ref[...]            # bias-add / ReLU stay in f32 on the VPU
        if relu:
            h = jnp.maximum(h, 0.0)
        return h

    h = x_ref[...]
    h = layer(h, w1_ref, b1_ref, True)
    h = layer(h, w2_ref, b2_ref, True)
    h = layer(h, w3_ref, b3_ref, True)
    h = layer(h, w4_ref, b4_ref, True)    # fc4 output padded to 128 lanes
    h = layer(h, w5_ref, b5_ref, False)   # fc5 output padded to 128 lanes
    # Unpadded store: out block is (TM, out_dim); drop the zero-padded lanes.
    o_ref[...] = h[:, : o_ref.shape[-1]].astype(o_ref.dtype)


def pad_params(params, compute_dtype=jnp.bfloat16):
    """Zero-pad fc4/fc5 to lane-dense (128) widths; cast weights to compute dtype."""
    (w1, b1), (w2, b2), (w3, b3), (w4, b4), (w5, b5) = params
    h4 = w4.shape[1]
    h4p = _round_up(h4, LANE)
    out_dim = w5.shape[1]
    out_pad = _round_up(out_dim, LANE)

    w4p = jnp.pad(w4, ((0, 0), (0, h4p - h4)))
    b4p = jnp.pad(b4, ((0, 0), (0, h4p - h4)))
    w5p = jnp.pad(w5, ((0, h4p - h4), (0, out_pad - out_dim)))
    b5p = jnp.pad(b5, ((0, 0), (0, out_pad - out_dim)))

    padded = [(w1, b1), (w2, b2), (w3, b3), (w4p, b4p), (w5p, b5p)]
    padded = [(w.astype(compute_dtype), b.astype(jnp.float32)) for w, b in padded]
    return padded, out_dim


def dqn_forward(x, params, *, block_m=1024, compute_dtype=jnp.bfloat16):
    """x: (B, input_dim) f32; params: list of (W, b) with W:(in,out), b:(1,out)."""
    B, input_dim = x.shape
    padded, out_dim = pad_params(params, compute_dtype)

    # Batch tiling: at least 8 rows (sublane granularity), at most block_m.
    tm = min(block_m, _round_up(B, 8))
    # v7x has 2 TensorCores: give the "parallel" batch axis >= 2 grid steps
    # for mid-size batches so one core isn't idle.
    if 128 <= B < 2 * block_m:
        tm = min(tm, _round_up(pl.cdiv(B, 2), 8))
    bp = _round_up(B, tm)
    if bp != B:
        x = jnp.pad(x, ((0, bp - B), (0, 0)))

    flat = []
    for w, b in padded:
        flat.extend([w, b])

    # Weights/biases: full-array blocks, constant index_map -> VMEM-resident.
    weight_specs = [pl.BlockSpec(a.shape, lambda i: (0, 0)) for a in flat]

    out = pl.pallas_call(
        dqn_kernel,
        out_shape=jax.ShapeDtypeStruct((bp, out_dim), jnp.float32),
        grid=(bp // tm,),
        in_specs=[pl.BlockSpec((tm, input_dim), lambda i: (i, 0))] + weight_specs,
        out_specs=pl.BlockSpec((tm, out_dim), lambda i: (i, 0)),
        compiler_params=pltpu.CompilerParams(
            dimension_semantics=("parallel",)),
    )(x, *flat)
    return out if bp == B else out[:B]


def init_params(key, input_dim, output_dim):
    dims = [input_dim, 128, 256, 128, 64, output_dim]
    params = []
    for i in range(5):
        fan_in, fan_out = dims[i], dims[i + 1]
        key, kw, kb = jax.random.split(key, 3)
        bound = 1.0 / jnp.sqrt(fan_in)
        # Stored as (in, out) = torch weight (out, in) transposed.
        w = jax.random.uniform(kw, (fan_in, fan_out), jnp.float32, -bound, bound)
        b = jax.random.uniform(kb, (1, fan_out), jnp.float32, -bound, bound)
        params.append((w, b))
    return params


def dqn_reference(x, params):
    h = x
    for i, (w, b) in enumerate(params):
        h = h @ w + b
        if i < len(params) - 1:
            h = jnp.maximum(h, 0.0)
    return h


if __name__ == "__main__":
    key = jax.random.PRNGKey(0)
    input_dim, output_dim = 16, 8
    batch = 300  # non-multiple of the tile: exercises padding + a 2-step grid

    key, kx = jax.random.split(key)
    x = jax.random.normal(kx, (batch, input_dim), jnp.float32)
    params = init_params(key, input_dim, output_dim)

    ref = dqn_reference(x, params)

    # f32 compute path: bit-tight check against the pure-JAX reference.
    fwd_f32 = jax.jit(functools.partial(dqn_forward, compute_dtype=jnp.float32))
    out_f32 = jax.block_until_ready(fwd_f32(x, params))
    assert out_f32.shape == (batch, output_dim)
    assert jnp.allclose(out_f32, ref, atol=1e-4, rtol=1e-4)

    # bf16 matmul operands / f32 accumulation: the performance default.
    fwd_bf16 = jax.jit(functools.partial(dqn_forward, compute_dtype=jnp.bfloat16))
    out_bf16 = jax.block_until_ready(fwd_bf16(x, params))
    assert out_bf16.shape == (batch, output_dim)
    assert jnp.allclose(out_bf16, ref, atol=5e-2, rtol=5e-2)

    print("KERNEL_OK")
</pallas_src>

<mosaic_0001>
module attributes {stable_mosaic.version = 11 : i64} {
  func.func @dqn_kernel(%arg0: i32, %arg1: memref<152x16xf32, #tpu.memory_space<vmem>>, %arg2: memref<16x128xf32, #tpu.memory_space<vmem>>, %arg3: memref<1x128xf32, #tpu.memory_space<vmem>>, %arg4: memref<128x256xf32, #tpu.memory_space<vmem>>, %arg5: memref<1x256xf32, #tpu.memory_space<vmem>>, %arg6: memref<256x128xf32, #tpu.memory_space<vmem>>, %arg7: memref<1x128xf32, #tpu.memory_space<vmem>>, %arg8: memref<128x128xf32, #tpu.memory_space<vmem>>, %arg9: memref<1x128xf32, #tpu.memory_space<vmem>>, %arg10: memref<128x128xf32, #tpu.memory_space<vmem>>, %arg11: memref<1x128xf32, #tpu.memory_space<vmem>>, %arg12: memref<152x8xf32, #tpu.memory_space<vmem>>) attributes {dimension_semantics = [#tpu.dimension_semantics<parallel>], iteration_bounds = array<i64: 2>, scalar_prefetch = 0 : i64, scratch_operands = 0 : i64, tpu.core_type = #tpu.core_type<tc>, window_params = [{transform_indices = @transform_0, window_bounds = array<i64: 152, 16>}, {pipeline_mode = #tpu.pipeline_mode<synchronous>, transform_indices = @transform_1, window_bounds = array<i64: 16, 128>}, {pipeline_mode = #tpu.pipeline_mode<synchronous>, transform_indices = @transform_2, window_bounds = array<i64: 1, 128>}, {pipeline_mode = #tpu.pipeline_mode<synchronous>, transform_indices = @transform_3, window_bounds = array<i64: 128, 256>}, {pipeline_mode = #tpu.pipeline_mode<synchronous>, transform_indices = @transform_4, window_bounds = array<i64: 1, 256>}, {pipeline_mode = #tpu.pipeline_mode<synchronous>, transform_indices = @transform_5, window_bounds = array<i64: 256, 128>}, {pipeline_mode = #tpu.pipeline_mode<synchronous>, transform_indices = @transform_6, window_bounds = array<i64: 1, 128>}, {pipeline_mode = #tpu.pipeline_mode<synchronous>, transform_indices = @transform_7, window_bounds = array<i64: 128, 128>}, {pipeline_mode = #tpu.pipeline_mode<synchronous>, transform_indices = @transform_8, window_bounds = array<i64: 1, 128>}, {pipeline_mode = #tpu.pipeline_mode<synchronous>, transform_indices = @transform_9, window_bounds = array<i64: 128, 128>}, {pipeline_mode = #tpu.pipeline_mode<synchronous>, transform_indices = @transform_10, window_bounds = array<i64: 1, 128>}, {transform_indices = @transform_11, window_bounds = array<i64: 152, 8>}]} {
    %c0 = arith.constant 0 : index
    %c0_0 = arith.constant 0 : index
    %0 = vector.load %arg1[%c0, %c0_0] : memref<152x16xf32, #tpu.memory_space<vmem>>, vector<152x16xf32>
    %c0_1 = arith.constant 0 : index
    %c0_2 = arith.constant 0 : index
    %1 = vector.load %arg2[%c0_1, %c0_2] : memref<16x128xf32, #tpu.memory_space<vmem>>, vector<16x128xf32>
    %cst = arith.constant dense<0.000000e+00> : vector<152x128xf32>
    %2 = tpu.matmul %0, %1, %cst {dimension_numbers = #tpu.dot_dimension_numbers<[1], [0], [0], [1], [0, 0, 1, 1], [], []>} : vector<152x16xf32>, vector<16x128xf32>, vector<152x128xf32> -> vector<152x128xf32>
    %c0_3 = arith.constant 0 : index
    %c0_4 = arith.constant 0 : index
    %3 = vector.load %arg3[%c0_3, %c0_4] : memref<1x128xf32, #tpu.memory_space<vmem>>, vector<1x128xf32>
    %4 = vector.broadcast %3 : vector<1x128xf32> to vector<152x128xf32>
    %5 = arith.addf %2, %4 : vector<152x128xf32>
    %cst_5 = arith.constant 0.000000e+00 : f32
    %6 = vector.broadcast %cst_5 : f32 to vector<152x128xf32>
    %7 = arith.maximumf %5, %6 : vector<152x128xf32>
    %c0_6 = arith.constant 0 : index
    %c0_7 = arith.constant 0 : index
    %8 = vector.load %arg4[%c0_6, %c0_7] : memref<128x256xf32, #tpu.memory_space<vmem>>, vector<128x256xf32>
    %cst_8 = arith.constant dense<0.000000e+00> : vector<152x256xf32>
    %9 = tpu.matmul %7, %8, %cst_8 {dimension_numbers = #tpu.dot_dimension_numbers<[1], [0], [0], [1], [0, 0, 1, 1], [], []>} : vector<152x128xf32>, vector<128x256xf32>, vector<152x256xf32> -> vector<152x256xf32>
    %c0_9 = arith.constant 0 : index
    %c0_10 = arith.constant 0 : index
    %10 = vector.load %arg5[%c0_9, %c0_10] : memref<1x256xf32, #tpu.memory_space<vmem>>, vector<1x256xf32>
    %11 = vector.broadcast %10 : vector<1x256xf32> to vector<152x256xf32>
    %12 = arith.addf %9, %11 : vector<152x256xf32>
    %cst_11 = arith.constant 0.000000e+00 : f32
    %13 = vector.broadcast %cst_11 : f32 to vector<152x256xf32>
    %14 = arith.maximumf %12, %13 : vector<152x256xf32>
    %c0_12 = arith.constant 0 : index
    %c0_13 = arith.constant 0 : index
    %15 = vector.load %arg6[%c0_12, %c0_13] : memref<256x128xf32, #tpu.memory_space<vmem>>, vector<256x128xf32>
    %cst_14 = arith.constant dense<0.000000e+00> : vector<152x128xf32>
    %16 = tpu.matmul %14, %15, %cst_14 {dimension_numbers = #tpu.dot_dimension_numbers<[1], [0], [0], [1], [0, 0, 1, 1], [], []>} : vector<152x256xf32>, vector<256x128xf32>, vector<152x128xf32> -> vector<152x128xf32>
    %c0_15 = arith.constant 0 : index
    %c0_16 = arith.constant 0 : index
    %17 = vector.load %arg7[%c0_15, %c0_16] : memref<1x128xf32, #tpu.memory_space<vmem>>, vector<1x128xf32>
    %18 = vector.broadcast %17 : vector<1x128xf32> to vector<152x128xf32>
    %19 = arith.addf %16, %18 : vector<152x128xf32>
    %cst_17 = arith.constant 0.000000e+00 : f32
    %20 = vector.broadcast %cst_17 : f32 to vector<152x128xf32>
    %21 = arith.maximumf %19, %20 : vector<152x128xf32>
    %c0_18 = arith.constant 0 : index
    %c0_19 = arith.constant 0 : index
    %22 = vector.load %arg8[%c0_18, %c0_19] : memref<128x128xf32, #tpu.memory_space<vmem>>, vector<128x128xf32>
    %cst_20 = arith.constant dense<0.000000e+00> : vector<152x128xf32>
    %23 = tpu.matmul %21, %22, %cst_20 {dimension_numbers = #tpu.dot_dimension_numbers<[1], [0], [0], [1], [0, 0, 1, 1], [], []>} : vector<152x128xf32>, vector<128x128xf32>, vector<152x128xf32> -> vector<152x128xf32>
    %c0_21 = arith.constant 0 : index
    %c0_22 = arith.constant 0 : index
    %24 = vector.load %arg9[%c0_21, %c0_22] : memref<1x128xf32, #tpu.memory_space<vmem>>, vector<1x128xf32>
    %25 = vector.broadcast %24 : vector<1x128xf32> to vector<152x128xf32>
    %26 = arith.addf %23, %25 : vector<152x128xf32>
    %cst_23 = arith.constant 0.000000e+00 : f32
    %27 = vector.broadcast %cst_23 : f32 to vector<152x128xf32>
    %28 = arith.maximumf %26, %27 : vector<152x128xf32>
    %c0_24 = arith.constant 0 : index
    %c0_25 = arith.constant 0 : index
    %29 = vector.load %arg10[%c0_24, %c0_25] : memref<128x128xf32, #tpu.memory_space<vmem>>, vector<128x128xf32>
    %cst_26 = arith.constant dense<0.000000e+00> : vector<152x128xf32>
    %30 = tpu.matmul %28, %29, %cst_26 {dimension_numbers = #tpu.dot_dimension_numbers<[1], [0], [0], [1], [0, 0, 1, 1], [], []>} : vector<152x128xf32>, vector<128x128xf32>, vector<152x128xf32> -> vector<152x128xf32>
    %c0_27 = arith.constant 0 : index
    %c0_28 = arith.constant 0 : index
    %31 = vector.load %arg11[%c0_27, %c0_28] : memref<1x128xf32, #tpu.memory_space<vmem>>, vector<1x128xf32>
    %32 = vector.broadcast %31 : vector<1x128xf32> to vector<152x128xf32>
    %33 = arith.addf %30, %32 : vector<152x128xf32>
    %34 = vector.extract_strided_slice %33 {offsets = [0, 0], sizes = [152, 8], strides = [1, 1]} : vector<152x128xf32> to vector<152x8xf32>
    %c0_29 = arith.constant 0 : index
    %c0_30 = arith.constant 0 : index
    %35 = vector.load %arg12[%c0_29, %c0_30] : memref<152x8xf32, #tpu.memory_space<vmem>>, vector<152x8xf32>
    tpu.vector_store %arg12[%c0_29, %c0_30], %34 {strides = array<i32>} : memref<152x8xf32, #tpu.memory_space<vmem>>, vector<152x8xf32>,
    return
  }
  func.func @transform_0(%arg0: i32) -> (i32, i32) {
    %c0_i32 = arith.constant 0 : i32
    %c0_i32_0 = arith.constant 0 : i32
    return %arg0, %c0_i32 : i32, i32
  }
  func.func @transform_1(%arg0: i32) -> (i32, i32) {
    %c0_i32 = arith.constant 0 : i32
    %c0_i32_0 = arith.constant 0 : i32
    %c0_i32_1 = arith.constant 0 : i32
    return %c0_i32, %c0_i32_0 : i32, i32
  }
  func.func @transform_2(%arg0: i32) -> (i32, i32) {
    %c0_i32 = arith.constant 0 : i32
    %c0_i32_0 = arith.constant 0 : i32
    %c0_i32_1 = arith.constant 0 : i32
    return %c0_i32, %c0_i32_0 : i32, i32
  }
  func.func @transform_3(%arg0: i32) -> (i32, i32) {
    %c0_i32 = arith.constant 0 : i32
    %c0_i32_0 = arith.constant 0 : i32
    %c0_i32_1 = arith.constant 0 : i32
    return %c0_i32, %c0_i32_0 : i32, i32
  }
  func.func @transform_4(%arg0: i32) -> (i32, i32) {
    %c0_i32 = arith.constant 0 : i32
    %c0_i32_0 = arith.constant 0 : i32
    %c0_i32_1 = arith.constant 0 : i32
    return %c0_i32, %c0_i32_0 : i32, i32
  }
  func.func @transform_5(%arg0: i32) -> (i32, i32) {
    %c0_i32 = arith.constant 0 : i32
    %c0_i32_0 = arith.constant 0 : i32
    %c0_i32_1 = arith.constant 0 : i32
    return %c0_i32, %c0_i32_0 : i32, i32
  }
  func.func @transform_6(%arg0: i32) -> (i32, i32) {
    %c0_i32 = arith.constant 0 : i32
    %c0_i32_0 = arith.constant 0 : i32
    %c0_i32_1 = arith.constant 0 : i32
    return %c0_i32, %c0_i32_0 : i32, i32
  }
  func.func @transform_7(%arg0: i32) -> (i32, i32) {
    %c0_i32 = arith.constant 0 : i32
    %c0_i32_0 = arith.constant 0 : i32
    %c0_i32_1 = arith.constant 0 : i32
    return %c0_i32, %c0_i32_0 : i32, i32
  }
  func.func @transform_8(%arg0: i32) -> (i32, i32) {
    %c0_i32 = arith.constant 0 : i32
    %c0_i32_0 = arith.constant 0 : i32
    %c0_i32_1 = arith.constant 0 : i32
    return %c0_i32, %c0_i32_0 : i32, i32
  }
  func.func @transform_9(%arg0: i32) -> (i32, i32) {
    %c0_i32 = arith.constant 0 : i32
    %c0_i32_0 = arith.constant 0 : i32
    %c0_i32_1 = arith.constant 0 : i32
    return %c0_i32, %c0_i32_0 : i32, i32
  }
  func.func @transform_10(%arg0: i32) -> (i32, i32) {
    %c0_i32 = arith.constant 0 : i32
    %c0_i32_0 = arith.constant 0 : i32
    %c0_i32_1 = arith.constant 0 : i32
    return %c0_i32, %c0_i32_0 : i32, i32
  }
  func.func @transform_11(%arg0: i32) -> (i32, i32) {
    %c0_i32 = arith.constant 0 : i32
    %c0_i32_0 = arith.constant 0 : i32
    return %arg0, %c0_i32 : i32, i32
  }
}

</mosaic_0001>

<llo_original>
// kernel: dqn_forward.1
$region0: #{dqn_forward.1}
  #allocation0 [shape = 'u32[]', space=smem, size = 0x4, offset = 0x4, fixed_abs, tag = 'smem constant byte address 0x4 - core index']
  #allocation1 [shape = 'u32[144,128]{1,0:T(1,128)}', space=vmem, size = 0x12000, scoped, tag = 'internal scratch']
  %s0 = inlined_call_operand.vmem [shape: f32[304,16], index: 0, kind: input, shape index: {}]
  %s1 = inlined_call_operand.vmem [shape: f32[16,128], index: 1, kind: input, shape index: {}]
  %s2 = inlined_call_operand.vmem [shape: f32[1,128], index: 2, kind: input, shape index: {}]
  %s3 = inlined_call_operand.vmem [shape: f32[128,256], index: 3, kind: input, shape index: {}]
  %s4 = inlined_call_operand.vmem [shape: f32[1,256], index: 4, kind: input, shape index: {}]
  %s5 = inlined_call_operand.vmem [shape: f32[256,128], index: 5, kind: input, shape index: {}]
  %s6 = inlined_call_operand.vmem [shape: f32[1,128], index: 6, kind: input, shape index: {}]
  %s7 = inlined_call_operand.vmem [shape: f32[128,128], index: 7, kind: input, shape index: {}]
  %s8 = inlined_call_operand.vmem [shape: f32[1,128], index: 8, kind: input, shape index: {}]
  %s9 = inlined_call_operand.vmem [shape: f32[128,128], index: 9, kind: input, shape index: {}]
  %s10 = inlined_call_operand.vmem [shape: f32[1,128], index: 10, kind: input, shape index: {}]
  %s11 = inlined_call_operand.vmem [shape: f32[304,8], index: 11, kind: output, shape index: {}]
  %s12 = sld [smem:[#allocation0]]
  $region77: #{dqn_forward.1} parent=0
    _
  %s14 = ssub.s32 1, %s12
  %s15 = scalar_select 0, %s14, %s12
  loop: start=0, step=1, limit=4
  $region2: #{dqn_forward.1} parent=0 // loop_pre_header
    _
  $region3: #{dqn_forward.1} parent=0 // loop_header
    %s17 = sphi 0, %s21
    %p18 = scmp.ge.s32.totalorder %s17, 4
    %s27 = sphi 0, %s29
    %s30 = sphi 0, %s27
    %s31 = sphi 0, %s30
    %s47 = sphi 0, %s31
    %s51 = sphi 0, %s51
    %s53 = sphi 0, %s51
    %s54 = sphi 0, %s53
    %s68 = sphi 0, %s54
    %s72 = sphi 0, %s72
    %s74 = sphi 0, %s72
    %s75 = sphi 0, %s74
    %s89 = sphi 0, %s75
    %s93 = sphi 0, %s93
    %s95 = sphi 0, %s93
    %s96 = sphi 0, %s95
    %s110 = sphi 0, %s96
    %s114 = sphi 0, %s114
    %s116 = sphi 0, %s114
    %s117 = sphi 0, %s116
    %s131 = sphi 0, %s117
    %s135 = sphi 0, %s135
    %s137 = sphi 0, %s135
    %s138 = sphi 0, %s137
    %s152 = sphi 0, %s138
    %s156 = sphi 0, %s156
    %s158 = sphi 0, %s156
    %s159 = sphi 0, %s158
    %s173 = sphi 0, %s159
    %s177 = sphi 0, %s177
    %s179 = sphi 0, %s177
    %s180 = sphi 0, %s179
    %s194 = sphi 0, %s180
    %s198 = sphi 0, %s198
    %s200 = sphi 0, %s198
    %s201 = sphi 0, %s200
    %s215 = sphi 0, %s201
    %s219 = sphi 0, %s219
    %s221 = sphi 0, %s219
    %s222 = sphi 0, %s221
    %s236 = sphi 0, %s222
    %s240 = sphi 0, %s240
    %s242 = sphi 0, %s240
    %s243 = sphi 0, %s242
    %s257 = sphi 0, %s243
    %s263 = sphi 0, %s265
    %s266 = sphi 0, %s263
    %s267 = sphi 0, %s266
    %s283 = sphi 0, %s267
  $region4: #{dqn_forward.1} parent=0 // loop_header_branch
    %20 = sbr.rel (%p18) target = $region8
  $region5: #{dqn_forward.1} parent=0 // loop_body
    %s22 = ssub.s32 %s17, 1
    %s23 = ssub.s32 %s17, 2
    %s24 = sadd.s32 %s17, 1
    %s25 = ssub.s32 %s17, %s24
    %p26 = scmp.eq.s32.totalorder %s25, 0
    %s28 = sadd.s32 %s27, 1
    %s29 = scalar_select %p26, %s27, %s28
    %p32 = pneg %p26
    %p33 = scmp.eq.s32.totalorder %s17, 1
    %p34 = por %p32, %p33
    %p35 = scmp.ne.s32.totalorder %s27, %s30
    %p36 = scmp.eq.s32.totalorder %s17, 0
    %p37 = por %p35, %p36
    %p38 = scmp.ne.s32.totalorder %s27, %s30
    %p39 = scmp.eq.s32.totalorder %s22, 1
    %p40 = por %p38, %p39
    %p41 = scmp.ne.s32.totalorder %s30, %s31
    %p42 = scmp.eq.s32.totalorder %s22, 0
    %p43 = por %p41, %p42
    %p44 = scmp.ne.s32.totalorder %s30, %s31
    %p45 = scmp.eq.s32.totalorder %s23, 1
    %p46 = por %p44, %p45
    %p48 = scmp.ne.s32.totalorder %s31, %s47
    %p49 = scmp.eq.s32.totalorder %s23, 0
    %p50 = por %p48, %p49
    %s52 = sadd.s32 %s51, 1
    %p55 = scmp.eq.s32.totalorder %s17, 1
    %p56 = scmp.ne.s32.totalorder %s51, %s53
    %p57 = scmp.eq.s32.totalorder %s17, 0
    %p58 = por %p56, %p57
    %p59 = scmp.ne.s32.totalorder %s51, %s53
    %p60 = scmp.eq.s32.totalorder %s22, 1
    %p61 = por %p59, %p60
    %p62 = scmp.ne.s32.totalorder %s53, %s54
    %p63 = scmp.eq.s32.totalorder %s22, 0
    %p64 = por %p62, %p63
    %p65 = scmp.ne.s32.totalorder %s53, %s54
    %p66 = scmp.eq.s32.totalorder %s23, 1
    %p67 = por %p65, %p66
    %p69 = scmp.ne.s32.totalorder %s54, %s68
    %p70 = scmp.eq.s32.totalorder %s23, 0
    %p71 = por %p69, %p70
    %s73 = sadd.s32 %s72, 1
    %p76 = scmp.eq.s32.totalorder %s17, 1
    %p77 = scmp.ne.s32.totalorder %s72, %s74
    %p78 = scmp.eq.s32.totalorder %s17, 0
    %p79 = por %p77, %p78
    %p80 = scmp.ne.s32.totalorder %s72, %s74
    %p81 = scmp.eq.s32.totalorder %s22, 1
    %p82 = por %p80, %p81
    %p83 = scmp.ne.s32.totalorder %s74, %s75
    %p84 = scmp.eq.s32.totalorder %s22, 0
    %p85 = por %p83, %p84
    %p86 = scmp.ne.s32.totalorder %s74, %s75
    %p87 = scmp.eq.s32.totalorder %s23, 1
    %p88 = por %p86, %p87
    %p90 = scmp.ne.s32.totalorder %s75, %s89
    %p91 = scmp.eq.s32.totalorder %s23, 0
    %p92 = por %p90, %p91
    %s94 = sadd.s32 %s93, 1
    %p97 = scmp.eq.s32.totalorder %s17, 1
    %p98 = scmp.ne.s32.totalorder %s93, %s95
    %p99 = scmp.eq.s32.totalorder %s17, 0
    %p100 = por %p98, %p99
    %p101 = scmp.ne.s32.totalorder %s93, %s95
    %p102 = scmp.eq.s32.totalorder %s22, 1
    %p103 = por %p101, %p102
    %p104 = scmp.ne.s32.totalorder %s95, %s96
    %p105 = scmp.eq.s32.totalorder %s22, 0
    %p106 = por %p104, %p105
    %p107 = scmp.ne.s32.totalorder %s95, %s96
    %p108 = scmp.eq.s32.totalorder %s23, 1
    %p109 = por %p107, %p108
    %p111 = scmp.ne.s32.totalorder %s96, %s110
    %p112 = scmp.eq.s32.totalorder %s23, 0
    %p113 = por %p111, %p112
    %s115 = sadd.s32 %s114, 1
    %p118 = scmp.eq.s32.totalorder %s17, 1
    %p119 = scmp.ne.s32.totalorder %s114, %s116
    %p120 = scmp.eq.s32.totalorder %s17, 0
    %p121 = por %p119, %p120
    %p122 = scmp.ne.s32.totalorder %s114, %s116
    %p123 = scmp.eq.s32.totalorder %s22, 1
    %p124 = por %p122, %p123
    %p125 = scmp.ne.s32.totalorder %s116, %s117
    %p126 = scmp.eq.s32.totalorder %s22, 0
    %p127 = por %p125, %p126
    %p128 = scmp.ne.s32.totalorder %s116, %s117
    %p129 = scmp.eq.s32.totalorder %s23, 1
    %p130 = por %p128, %p129
    %p132 = scmp.ne.s32.totalorder %s117, %s131
    %p133 = scmp.eq.s32.totalorder %s23, 0
    %p134 = por %p132, %p133
    %s136 = sadd.s32 %s135, 1
    %p139 = scmp.eq.s32.totalorder %s17, 1
    %p140 = scmp.ne.s32.totalorder %s135, %s137
    %p141 = scmp.eq.s32.totalorder %s17, 0
    %p142 = por %p140, %p141
    %p143 = scmp.ne.s32.totalorder %s135, %s137
    %p144 = scmp.eq.s32.totalorder %s22, 1
    %p145 = por %p143, %p144
    %p146 = scmp.ne.s32.totalorder %s137, %s138
    %p147 = scmp.eq.s32.totalorder %s22, 0
    %p148 = por %p146, %p147
    %p149 = scmp.ne.s32.totalorder %s137, %s138
    %p150 = scmp.eq.s32.totalorder %s23, 1
    %p151 = por %p149, %p150
    %p153 = scmp.ne.s32.totalorder %s138, %s152
    %p154 = scmp.eq.s32.totalorder %s23, 0
    %p155 = por %p153, %p154
    %s157 = sadd.s32 %s156, 1
    %p160 = scmp.eq.s32.totalorder %s17, 1
    %p161 = scmp.ne.s32.totalorder %s156, %s158
    %p162 = scmp.eq.s32.totalorder %s17, 0
    %p163 = por %p161, %p162
    %p164 = scmp.ne.s32.totalorder %s156, %s158
    %p165 = scmp.eq.s32.totalorder %s22, 1
    %p166 = por %p164, %p165
    %p167 = scmp.ne.s32.totalorder %s158, %s159
    %p168 = scmp.eq.s32.totalorder %s22, 0
    %p169 = por %p167, %p168
    %p170 = scmp.ne.s32.totalorder %s158, %s159
    %p171 = scmp.eq.s32.totalorder %s23, 1
    %p172 = por %p170, %p171
    %p174 = scmp.ne.s32.totalorder %s159, %s173
    %p175 = scmp.eq.s32.totalorder %s23, 0
    %p176 = por %p174, %p175
    %s178 = sadd.s32 %s177, 1
    %p181 = scmp.eq.s32.totalorder %s17, 1
    %p182 = scmp.ne.s32.totalorder %s177, %s179
    %p183 = scmp.eq.s32.totalorder %s17, 0
    %p184 = por %p182, %p183
    %p185 = scmp.ne.s32.totalorder %s177, %s179
    %p186 = scmp.eq.s32.totalorder %s22, 1
    %p187 = por %p185, %p186
    %p188 = scmp.ne.s32.totalorder %s179, %s180
    %p189 = scmp.eq.s32.totalorder %s22, 0
    %p190 = por %p188, %p189
    %p191 = scmp.ne.s32.totalorder %s179, %s180
    %p192 = scmp.eq.s32.totalorder %s23, 1
    %p193 = por %p191, %p192
    %p195 = scmp.ne.s32.totalorder %s180, %s194
    %p196 = scmp.eq.s32.totalorder %s23, 0
    %p197 = por %p195, %p196
    %s199 = sadd.s32 %s198, 1
    %p202 = scmp.eq.s32.totalorder %s17, 1
    %p203 = scmp.ne.s32.totalorder %s198, %s200
    %p204 = scmp.eq.s32.totalorder %s17, 0
    %p205 = por %p203, %p204
    %p206 = scmp.ne.s32.totalorder %s198, %s200
    %p207 = scmp.eq.s32.totalorder %s22, 1
    %p208 = por %p206, %p207
    %p209 = scmp.ne.s32.totalorder %s200, %s201
    %p210 = scmp.eq.s32.totalorder %s22, 0
    %p211 = por %p209, %p210
    %p212 = scmp.ne.s32.totalorder %s200, %s201
    %p213 = scmp.eq.s32.totalorder %s23, 1
    %p214 = por %p212, %p213
    %p216 = scmp.ne.s32.totalorder %s201, %s215
    %p217 = scmp.eq.s32.totalorder %s23, 0
    %p218 = por %p216, %p217
    %s220 = sadd.s32 %s219, 1
    %p223 = scmp.eq.s32.totalorder %s17, 1
    %p224 = scmp.ne.s32.totalorder %s219, %s221
    %p225 = scmp.eq.s32.totalorder %s17, 0
    %p226 = por %p224, %p225
    %p227 = scmp.ne.s32.totalorder %s219, %s221
    %p228 = scmp.eq.s32.totalorder %s22, 1
    %p229 = por %p227, %p228
    %p230 = scmp.ne.s32.totalorder %s221, %s222
    %p231 = scmp.eq.s32.totalorder %s22, 0
    %p232 = por %p230, %p231
    %p233 = scmp.ne.s32.totalorder %s221, %s222
    %p234 = scmp.eq.s32.totalorder %s23, 1
    %p235 = por %p233, %p234
    %p237 = scmp.ne.s32.totalorder %s222, %s236
    %p238 = scmp.eq.s32.totalorder %s23, 0
    %p239 = por %p237, %p238
    %s241 = sadd.s32 %s240, 1
    %p244 = scmp.eq.s32.totalorder %s17, 1
    %p245 = scmp.ne.s32.totalorder %s240, %s242
    %p246 = scmp.eq.s32.totalorder %s17, 0
    %p247 = por %p245, %p246
    %p248 = scmp.ne.s32.totalorder %s240, %s242
    %p249 = scmp.eq.s32.totalorder %s22, 1
    %p250 = por %p248, %p249
    %p251 = scmp.ne.s32.totalorder %s242, %s243
    %p252 = scmp.eq.s32.totalorder %s22, 0
    %p253 = por %p251, %p252
    %p254 = scmp.ne.s32.totalorder %s242, %s243
    %p255 = scmp.eq.s32.totalorder %s23, 1
    %p256 = por %p254, %p255
    %p258 = scmp.ne.s32.totalorder %s243, %s257
    %p259 = scmp.eq.s32.totalorder %s23, 0
    %p260 = por %p258, %p259
    %s261 = ssub.s32 %s17, %s24
    %p262 = scmp.eq.s32.totalorder %s261, 0
    %s264 = sadd.s32 %s263, 1
    %s265 = scalar_select %p262, %s263, %s264
    %p268 = pneg %p262
    %p269 = scmp.eq.s32.totalorder %s17, 1
    %p270 = por %p268, %p269
    %p271 = scmp.ne.s32.totalorder %s263, %s266
    %p272 = scmp.eq.s32.totalorder %s17, 0
    %p273 = por %p271, %p272
    %p274 = scmp.ne.s32.totalorder %s263, %s266
    %p275 = scmp.eq.s32.totalorder %s22, 1
    %p276 = por %p274, %p275
    %p277 = scmp.ne.s32.totalorder %s266, %s267
    %p278 = scmp.eq.s32.totalorder %s22, 0
    %p279 = por %p277, %p278
    %p280 = scmp.ne.s32.totalorder %s266, %s267
    %p281 = scmp.eq.s32.totalorder %s23, 1
    %p282 = por %p280, %p281
    %p284 = scmp.ne.s32.totalorder %s267, %s283
    %p285 = scmp.eq.s32.totalorder %s23, 0
    %p286 = por %p284, %p285
    %p287 = scmp.le.s32.totalorder 1, %s17
    %p288 = scmp.lt.s32.totalorder %s17, 3
    %p289 = pnand %p287, %p288
    %p290 = pneg %p289
    // Predicated region
    $region9: #{dqn_forward.1} parent=5 // pred_check
      _
    $region10: #{dqn_forward.1} parent=5 // pred_check_branch
      %292 = sbr.rel (%p289) target = $region12
    $region11: #{dqn_forward.1} parent=5 // pred_region
      %s293 = ssub.s32 %s17, 1
      // Predicated region
      $region13: #{dqn_forward.1} parent=11 // pred_check
        %p294 = pneg %p64
      $region14: #{dqn_forward.1} parent=11 // pred_check_branch
        %296 = sbr.rel (%p294) target = $region16
      $region15: #{dqn_forward.1} parent=11 // pred_region
        _
      $region16: #{dqn_forward.1} parent=11 // pred_fallthru
        _
      // Predicated region
      $region17: #{dqn_forward.1} parent=11 // pred_check
        %p297 = pneg %p85
      $region18: #{dqn_forward.1} parent=11 // pred_check_branch
        %299 = sbr.rel (%p297) target = $region20
      $region19: #{dqn_forward.1} parent=11 // pred_region
        _
      $region20: #{dqn_forward.1} parent=11 // pred_fallthru
        _
      // Predicated region
      $region21: #{dqn_forward.1} parent=11 // pred_check
        %p300 = pneg %p106
      $region22: #{dqn_forward.1} parent=11 // pred_check_branch
        %302 = sbr.rel (%p300) target = $region24
      $region23: #{dqn_forward.1} parent=11 // pred_region
        _
      $region24: #{dqn_forward.1} parent=11 // pred_fallthru
        _
      // Predicated region
      $region25: #{dqn_forward.1} parent=11 // pred_check
        %p303 = pneg %p127
      $region26: #{dqn_forward.1} parent=11 // pred_check_branch
        %305 = sbr.rel (%p303) target = $region28
      $region27: #{dqn_forward.1} parent=11 // pred_region
        _
      $region28: #{dqn_forward.1} parent=11 // pred_fallthru
        _
      // Predicated region
      $region29: #{dqn_forward.1} parent=11 // pred_check
        %p306 = pneg %p148
      $region30: #{dqn_forward.1} parent=11 // pred_check_branch
        %308 = sbr.rel (%p306) target = $region32
      $region31: #{dqn_forward.1} parent=11 // pred_region
        _
      $region32: #{dqn_forward.1} parent=11 // pred_fallthru
        _
      // Predicated region
      $region33: #{dqn_forward.1} parent=11 // pred_check
        %p309 = pneg %p169
      $region34: #{dqn_forward.1} parent=11 // pred_check_branch
        %311 = sbr.rel (%p309) target = $region36
      $region35: #{dqn_forward.1} parent=11 // pred_region
        _
      $region36: #{dqn_forward.1} parent=11 // pred_fallthru
        _
      // Predicated region
      $region37: #{dqn_forward.1} parent=11 // pred_check
        %p312 = pneg %p190
      $region38: #{dqn_forward.1} parent=11 // pred_check_branch
        %314 = sbr.rel (%p312) target = $region40
      $region39: #{dqn_forward.1} parent=11 // pred_region
        _
      $region40: #{dqn_forward.1} parent=11 // pred_fallthru
        _
      // Predicated region
      $region41: #{dqn_forward.1} parent=11 // pred_check
        %p315 = pneg %p211
      $region42: #{dqn_forward.1} parent=11 // pred_check_branch
        %317 = sbr.rel (%p315) target = $region44
      $region43: #{dqn_forward.1} parent=11 // pred_region
        _
      $region44: #{dqn_forward.1} parent=11 // pred_fallthru
        _
      // Predicated region
      $region45: #{dqn_forward.1} parent=11 // pred_check
        %p318 = pneg %p232
      $region46: #{dqn_forward.1} parent=11 // pred_check_branch
        %320 = sbr.rel (%p318) target = $region48
      $region47: #{dqn_forward.1} parent=11 // pred_region
        _
      $region48: #{dqn_forward.1} parent=11 // pred_fallthru
        _
      // Predicated region
      $region49: #{dqn_forward.1} parent=11 // pred_check
        %p321 = pneg %p253
      $region50: #{dqn_forward.1} parent=11 // pred_check_branch
        %323 = sbr.rel (%p321) target = $region52
      $region51: #{dqn_forward.1} parent=11 // pred_region
        _
      $region52: #{dqn_forward.1} parent=11 // pred_fallthru
        _
    $region12: #{dqn_forward.1} parent=5 // pred_fallthru
      _
    %p324 = scmp.lt.s32.totalorder %s17, 2
    // Predicated region
    $region53: #{dqn_forward.1} parent=5 // pred_check
      %p325 = pneg %p324
    $region54: #{dqn_forward.1} parent=5 // pred_check_branch
      %327 = sbr.rel (%p325) target = $region56
    $region55: #{dqn_forward.1} parent=5 // pred_region
      // Predicated region
      $region57: #{dqn_forward.1} parent=55 // pred_check
        %p328 = pneg %p37
      $region58: #{dqn_forward.1} parent=55 // pred_check_branch
        %330 = sbr.rel (%p328) target = $region60
      $region59: #{dqn_forward.1} parent=55 // pred_region
        %s331 = smul.u32 19, %s17
        %p332 = scmp.lt.s32.totalorder %s331, 37
        %s333 = scalar_select %p332, %s331, 37
        %s334 = smul.addr %s333, 8
        %s335 = scalar_lea.vmem %s0, %s334
        %s336 = smul.u32 19, %s17
      $region60: #{dqn_forward.1} parent=55 // pred_fallthru
        _
    $region56: #{dqn_forward.1} parent=5 // pred_fallthru
      _
    %p337 = scmp.le.s32.totalorder 1, %s17
    %p338 = scmp.lt.s32.totalorder %s17, 3
    %p339 = pnand %p337, %p338
    %p340 = pneg %p339
    // Predicated region
    $region61: #{dqn_forward.1} parent=5 // pred_check
      _
    $region62: #{dqn_forward.1} parent=5 // pred_check_branch
      %342 = sbr.rel (%p339) target = $region64
    $region63: #{dqn_forward.1} parent=5 // pred_region
      %s343 = ssub.s32 %s17, 1
      %s344 = smul.u32 19, %s22
      %p345 = scmp.lt.s32.totalorder %s344, 37
      %s346 = scalar_select %p345, %s344, 37
      %s347 = smul.addr %s346, 8
      %s348 = scalar_lea.vmem %s0, %s347
      %p349 = pneg %p43
      %p350 = pneg %p40
      %p351 = pneg %p64
      %p352 = pneg %p61
      %p353 = pneg %p85
      %p354 = pneg %p82
      %p355 = pneg %p106
      %p356 = pneg %p103
      %p357 = pneg %p127
      %p358 = pneg %p124
      %p359 = pneg %p148
      %p360 = pneg %p145
      %p361 = pneg %p169
      %p362 = pneg %p166
      %p363 = pneg %p190
      %p364 = pneg %p187
      %p365 = pneg %p211
      %p366 = pneg %p208
      %p367 = pneg %p232
      %p368 = pneg %p229
      %p369 = pneg %p253
      %p370 = pneg %p250
      %p371 = pneg %p279
      %p372 = pneg %p276
      %s373 = smul.u32 19, %s22
      %p374 = scmp.lt.s32.totalorder %s373, 37
      %s375 = scalar_select %p374, %s373, 37
      %s376 = smul.addr %s375, 8
      %s377 = scalar_lea.vmem %s11, %s376
      %s378 = smul.u32 19, %s22
      %p379 = scmp.lt.s32.totalorder %s378, 37
      %s380 = scalar_select %p379, %s378, 37
      %s381 = smul.addr %s380, 8
      %s382 = scalar_lea.vmem %s0, %s381
      %s383 = smul.u32 19, %s22
      %s384 = smul.u32 19, %s22
      %p385 = scmp.lt.s32.totalorder %s384, 37
      %s386 = scalar_select %p385, %s384, 37
      %s387 = smul.addr %s386, 8
      %s388 = scalar_lea.vmem %s11, %s387
      %s389 = smul.u32 19, %s22
      %v390 = vld [vmem:[%s382] sm:$0xff]
      %v391 = vld [vmem:[%s382 + $0x8] sm:$0xff]
      %v392 = vld [vmem:[%s382 + $0x10] sm:$0xff]
      %v393 = vld [vmem:[%s382 + $0x18] sm:$0xff]
      %v394 = vld [vmem:[%s382 + $0x20] sm:$0xff]
      %v395 = vld [vmem:[%s382 + $0x28] sm:$0xff]
      %v396 = vld [vmem:[%s382 + $0x30] sm:$0xff]
      %v397 = vld [vmem:[%s382 + $0x38] sm:$0xff]
      %v398 = vld [vmem:[%s382 + $0x40] sm:$0xff]
      %v399 = vld [vmem:[%s382 + $0x48] sm:$0xff]
      %v400 = vld [vmem:[%s382 + $0x50] sm:$0xff]
      %v401 = vld [vmem:[%s382 + $0x58] sm:$0xff]
      %v402 = vld [vmem:[%s382 + $0x60] sm:$0xff]
      %v403 = vld [vmem:[%s382 + $0x68] sm:$0xff]
      %v404 = vld [vmem:[%s382 + $0x70] sm:$0xff]
      %v405 = vld [vmem:[%s382 + $0x78] sm:$0xff]
      %v406 = vld [vmem:[%s382 + $0x80] sm:$0xff]
      %v407 = vld [vmem:[%s382 + $0x88] sm:$0xff]
      %v408 = vld [vmem:[%s382 + $0x90] sm:$0xff]
      %v409 = vld [vmem:[%s1] sm:$0xff]
      %v410 = vld [vmem:[%s1 + $0x8] sm:$0xff]
      %v411 = vld [vmem:[%s2] sm:$0x1]
      %v413 = vlaneseq
      %v414 = vshrl.u32 %v413, 7
      %v415 = vsub.s32 0, %v414
      %v416 = vrot.slane %v411, %v415
      %vm418 = vcmask 130048
      %v420 = vsel %vm418, %v390, 0
      %v423 = vsel %vm418, %v391, 0
      %v426 = vsel %vm418, %v392, 0
      %v429 = vsel %vm418, %v393, 0
      %v432 = vsel %vm418, %v394, 0
      %v435 = vsel %vm418, %v395, 0
      %v438 = vsel %vm418, %v396, 0
      %v441 = vsel %vm418, %v397, 0
      %v444 = vsel %vm418, %v398, 0
      %v447 = vsel %vm418, %v399, 0
      %v450 = vsel %vm418, %v400, 0
      %v453 = vsel %vm418, %v401, 0
      %v456 = vsel %vm418, %v402, 0
      %v459 = vsel %vm418, %v403, 0
      %v462 = vsel %vm418, %v404, 0
      %v465 = vsel %vm418, %v405, 0
      %v468 = vsel %vm418, %v406, 0
      %v471 = vsel %vm418, %v407, 0
      %v474 = vsel %vm418, %v408, 0
      %476 = vmatprep.subr.mxu0 0.0
      %477 = vmatpush1.msra.mxu0 %v409
      %478 = vmatprep.subr.mxu0 0.0
      %479 = vmatpush1.msra.mxu0 %v410
      %480 = vmatprep.subr.mxu0 0.0
      %481 = vmatpush1.msra.mxu0 0.0
      %482 = vmatprep.subr.mxu0 0.0
      %483 = vmatpush1.msra.mxu0 0.0
      %484 = vmatprep.subr.mxu0 0.0
      %485 = vmatpush1.msra.mxu0 0.0
      %486 = vmatprep.subr.mxu0 0.0
      %487 = vmatpush1.msra.mxu0 0.0
      %488 = vmatprep.subr.mxu0 0.0
      %489 = vmatpush1.msra.mxu0 0.0
      %490 = vmatprep.subr.mxu0 0.0
      %491 = vmatpush1.msra.mxu0 0.0
      %492 = vmatprep.subr.mxu0 0.0
      %493 = vmatpush1.msra.mxu0 0.0
      %494 = vmatprep.subr.mxu0 0.0
      %495 = vmatpush1.msra.mxu0 0.0
      %496 = vmatprep.subr.mxu0 0.0
      %497 = vmatpush1.msra.mxu0 0.0
      %498 = vmatprep.subr.mxu0 0.0
      %499 = vmatpush1.msra.mxu0 0.0
      %500 = vmatprep.subr.mxu0 0.0
      %501 = vmatpush1.msra.mxu0 0.0
      %502 = vmatprep.subr.mxu0 0.0
      %503 = vmatpush1.msra.mxu0 0.0
      %504 = vmatprep.subr.mxu0 0.0
      %505 = vmatpush1.msra.mxu0 0.0
      %506 = vmatprep.subr.mxu0 0.0
      %507 = vmatpush1.msra.mxu0 0.0
      %508 = vmatprep.subr.mxu0 0.0
      %509 = vmatpush1.msra.mxu0 0.0
      %510 = vmatprep.subr.mxu0 0.0
      %511 = vmatpush1.msra.mxu0 0.0
      %512 = vmatprep.subr.mxu0 0.0
      %513 = vmatpush1.msra.mxu0 0.0
      %514 = vmatprep.subr.mxu0 0.0
      %515 = vmatpush1.msra.mxu0 0.0
      %516 = vmatprep.subr.mxu0 0.0
      %517 = vmatpush1.msra.mxu0 0.0
      %518 = vmatprep.subr.mxu0 0.0
      %519 = vmatpush1.msra.mxu0 0.0
      %520 = vmatprep.subr.mxu0 0.0
      %521 = vmatpush1.msra.mxu0 0.0
      %522 = vmatprep.subr.mxu0 0.0
      %523 = vmatpush1.msra.mxu0 0.0
      %524 = vmatprep.subr.mxu0 0.0
      %525 = vmatpush1.msra.mxu0 0.0
      %526 = vmatprep.subr.mxu0 0.0
      %527 = vmatpush1.msra.mxu0 0.0
      %528 = vmatprep.subr.mxu0 0.0
      %529 = vmatpush1.msra.mxu0 0.0
      %530 = vmatprep.subr.mxu0 0.0
      %531 = vmatpush1.msra.mxu0 0.0
      %532 = vmatprep.subr.mxu0 0.0
      %533 = vmatpush1.msra.mxu0 0.0
      %534 = vmatprep.subr.mxu0 0.0
      %535 = vmatpush1.msra.mxu0 0.0
      %536 = vmatprep.subr.mxu0 0.0
      %537 = vmatpush1.msra.mxu0 0.0
      %538 = vmatprep.subr.mxu0 0.0
      %539 = vmatpush1.msra.mxu0 0.0
      %540 = vmatprep.mubr.f32.mxu0 0.0
      %541 = vmatmul.mubr.f32.gmra.mrb[0].mxu0 %v420
      %v542 = vpop.f32.mrb[0].mxu0
      %v543 = vadd.f32 %v416, %v542
      %v544 = vpop.f32.mrb[0].mxu0
      %545 = vmatprep.mubr.f32.mxu0 0.0
      %546 = vmatmul.mubr.f32.gmra.mrb[0].mxu0 %v423
      %v547 = vpop.f32.mrb[0].mxu0
      %v548 = vadd.f32 %v416, %v547
      %v549 = vpop.f32.mrb[0].mxu0
      %550 = vmatprep.mubr.f32.mxu0 0.0
      %551 = vmatmul.mubr.f32.gmra.mrb[0].mxu0 %v426
      %v552 = vpop.f32.mrb[0].mxu0
      %v553 = vadd.f32 %v416, %v552
      %v554 = vpop.f32.mrb[0].mxu0
      %555 = vmatprep.mubr.f32.mxu0 0.0
      %556 = vmatmul.mubr.f32.gmra.mrb[0].mxu0 %v429
      %v557 = vpop.f32.mrb[0].mxu0
      %v558 = vadd.f32 %v416, %v557
      %v559 = vpop.f32.mrb[0].mxu0
      %560 = vmatprep.mubr.f32.mxu0 0.0
      %561 = vmatmul.mubr.f32.gmra.mrb[0].mxu0 %v432
      %v562 = vpop.f32.mrb[0].mxu0
      %v563 = vadd.f32 %v416, %v562
      %v564 = vpop.f32.mrb[0].mxu0
      %565 = vmatprep.mubr.f32.mxu0 0.0
      %566 = vmatmul.mubr.f32.gmra.mrb[0].mxu0 %v435
      %v567 = vpop.f32.mrb[0].mxu0
      %v568 = vadd.f32 %v416, %v567
      %v569 = vpop.f32.mrb[0].mxu0
      %570 = vmatprep.mubr.f32.mxu0 0.0
      %571 = vmatmul.mubr.f32.gmra.mrb[0].mxu0 %v438
      %v572 = vpop.f32.mrb[0].mxu0
      %v573 = vadd.f32 %v416, %v572
      %v574 = vpop.f32.mrb[0].mxu0
      %575 = vmatprep.mubr.f32.mxu0 0.0
      %576 = vmatmul.mubr.f32.gmra.mrb[0].mxu0 %v441
      %v577 = vpop.f32.mrb[0].mxu0
      %v578 = vadd.f32 %v416, %v577
      %v579 = vpop.f32.mrb[0].mxu0
      %580 = vmatprep.mubr.f32.mxu0 0.0
      %581 = vmatmul.mubr.f32.gmra.mrb[0].mxu0 %v444
      %v582 = vpop.f32.mrb[0].mxu0
      %v583 = vadd.f32 %v416, %v582
      %v584 = vpop.f32.mrb[0].mxu0
      %585 = vmatprep.mubr.f32.mxu0 0.0
      %586 = vmatmul.mubr.f32.gmra.mrb[0].mxu0 %v447
      %v587 = vpop.f32.mrb[0].mxu0
      %v588 = vadd.f32 %v416, %v587
      %v589 = vpop.f32.mrb[0].mxu0
      %590 = vmatprep.mubr.f32.mxu0 0.0
      %591 = vmatmul.mubr.f32.gmra.mrb[0].mxu0 %v450
      %v592 = vpop.f32.mrb[0].mxu0
      %v593 = vadd.f32 %v416, %v592
      %v594 = vpop.f32.mrb[0].mxu0
      %595 = vmatprep.mubr.f32.mxu0 0.0
      %596 = vmatmul.mubr.f32.gmra.mrb[0].mxu0 %v453
      %v597 = vpop.f32.mrb[0].mxu0
      %v598 = vadd.f32 %v416, %v597
      %v599 = vpop.f32.mrb[0].mxu0
      %600 = vmatprep.mubr.f32.mxu0 0.0
      %601 = vmatmul.mubr.f32.gmra.mrb[0].mxu0 %v456
      %v602 = vpop.f32.mrb[0].mxu0
      %v603 = vadd.f32 %v416, %v602
      %v604 = vpop.f32.mrb[0].mxu0
      %605 = vmatprep.mubr.f32.mxu0 0.0
      %606 = vmatmul.mubr.f32.gmra.mrb[0].mxu0 %v459
      %v607 = vpop.f32.mrb[0].mxu0
      %v608 = vadd.f32 %v416, %v607
      %v609 = vpop.f32.mrb[0].mxu0
      %610 = vmatprep.mubr.f32.mxu0 0.0
      %611 = vmatmul.mubr.f32.gmra.mrb[0].mxu0 %v462
      %v612 = vpop.f32.mrb[0].mxu0
      %v613 = vadd.f32 %v416, %v612
      %v614 = vpop.f32.mrb[0].mxu0
      %615 = vmatprep.mubr.f32.mxu0 0.0
      %616 = vmatmul.mubr.f32.gmra.mrb[0].mxu0 %v465
      %v617 = vpop.f32.mrb[0].mxu0
      %v618 = vadd.f32 %v416, %v617
      %v619 = vpop.f32.mrb[0].mxu0
      %620 = vmatprep.mubr.f32.mxu0 0.0
      %621 = vmatmul.mubr.f32.gmra.mrb[0].mxu0 %v468
      %v622 = vpop.f32.mrb[0].mxu0
      %v623 = vadd.f32 %v416, %v622
      %v624 = vpop.f32.mrb[0].mxu0
      %625 = vmatprep.mubr.f32.mxu0 0.0
      %626 = vmatmul.mubr.f32.gmra.mrb[0].mxu0 %v471
      %v627 = vpop.f32.mrb[0].mxu0
      %v628 = vadd.f32 %v416, %v627
      %v629 = vpop.f32.mrb[0].mxu0
      %630 = vmatprep.mubr.f32.mxu0 0.0
      %631 = vmatmul.mubr.f32.gmra.mrb[0].mxu0 %v474
      %v632 = vpop.f32.mrb[0].mxu0
      %v633 = vadd.f32 %v416, %v632
      %v634 = vpop.f32.mrb[0].mxu0
      %635 = vdwg.mxu0
      %v636 = vmax.f32 %v543, 0.0
      %v637 = vmax.f32 %v548, 0.0
      %v638 = vmax.f32 %v553, 0.0
      %v639 = vmax.f32 %v558, 0.0
      %v640 = vmax.f32 %v563, 0.0
      %v641 = vmax.f32 %v568, 0.0
      %v642 = vmax.f32 %v573, 0.0
      %v643 = vmax.f32 %v578, 0.0
      %v644 = vmax.f32 %v583, 0.0
      %v645 = vmax.f32 %v588, 0.0
      %v646 = vmax.f32 %v593, 0.0
      %v647 = vmax.f32 %v598, 0.0
      %v648 = vmax.f32 %v603, 0.0
      %v649 = vmax.f32 %v608, 0.0
      %v650 = vmax.f32 %v613, 0.0
      %v651 = vmax.f32 %v618, 0.0
      %v652 = vmax.f32 %v623, 0.0
      %v653 = vmax.f32 %v628, 0.0
      %v654 = vmax.f32 %v633, 0.0
      %v655 = vld [vmem:[%s3] sm:$0xff]
      %v656 = vld [vmem:[%s3 + $0x8] sm:$0xff]
      %v657 = vld [vmem:[%s3 + $0x10] sm:$0xff]
      %v658 = vld [vmem:[%s3 + $0x18] sm:$0xff]
      %v659 = vld [vmem:[%s3 + $0x20] sm:$0xff]
      %v660 = vld [vmem:[%s3 + $0x28] sm:$0xff]
      %v661 = vld [vmem:[%s3 + $0x30] sm:$0xff]
      %v662 = vld [vmem:[%s3 + $0x38] sm:$0xff]
      %v663 = vld [vmem:[%s3 + $0x40] sm:$0xff]
      %v664 = vld [vmem:[%s3 + $0x48] sm:$0xff]
      %v665 = vld [vmem:[%s3 + $0x50] sm:$0xff]
      %v666 = vld [vmem:[%s3 + $0x58] sm:$0xff]
      %v667 = vld [vmem:[%s3 + $0x60] sm:$0xff]
      %v668 = vld [vmem:[%s3 + $0x68] sm:$0xff]
      %v669 = vld [vmem:[%s3 + $0x70] sm:$0xff]
      %v670 = vld [vmem:[%s3 + $0x78] sm:$0xff]
      %v671 = vld [vmem:[%s3 + $0x80] sm:$0xff]
      %v672 = vld [vmem:[%s3 + $0x88] sm:$0xff]
      %v673 = vld [vmem:[%s3 + $0x90] sm:$0xff]
      %v674 = vld [vmem:[%s3 + $0x98] sm:$0xff]
      %v675 = vld [vmem:[%s3 + $0xa0] sm:$0xff]
      %v676 = vld [vmem:[%s3 + $0xa8] sm:$0xff]
      %v677 = vld [vmem:[%s3 + $0xb0] sm:$0xff]
      %v678 = vld [vmem:[%s3 + $0xb8] sm:$0xff]
      %v679 = vld [vmem:[%s3 + $0xc0] sm:$0xff]
      %v680 = vld [vmem:[%s3 + $0xc8] sm:$0xff]
      %v681 = vld [vmem:[%s3 + $0xd0] sm:$0xff]
      %v682 = vld [vmem:[%s3 + $0xd8] sm:$0xff]
      %v683 = vld [vmem:[%s3 + $0xe0] sm:$0xff]
      %v684 = vld [vmem:[%s3 + $0xe8] sm:$0xff]
      %v685 = vld [vmem:[%s3 + $0xf0] sm:$0xff]
      %v686 = vld [vmem:[%s3 + $0xf8] sm:$0xff]
      %v687 = vld [vmem:[%s4] sm:$0x3]
      %v689 = vlaneseq
      %v690 = vshrl.u32 %v689, 7
      %v691 = vsub.s32 0, %v690
      %v692 = vrot.slane %v687, %v691
      %v693 = vlaneseq
      %v694 = vshrl.u32 %v693, 7
      %v695 = vsub.s32 1, %v694
      %v696 = vrot.slane %v687, %v695
      %699 = vmatprep.subr.mxu0 %v656
      %700 = vmatpush1.msra.mxu0 %v655
      %701 = vmatprep.subr.mxu0 %v658
      %702 = vmatpush1.msra.mxu0 %v657
      %703 = vmatprep.subr.mxu0 %v660
      %704 = vmatpush1.msra.mxu0 %v659
      %705 = vmatprep.subr.mxu0 %v662
      %706 = vmatpush1.msra.mxu0 %v661
      %707 = vmatprep.subr.mxu0 %v664
      %708 = vmatpush1.msra.mxu0 %v663
      %709 = vmatprep.subr.mxu0 %v666
      %710 = vmatpush1.msra.mxu0 %v665
      %711 = vmatprep.subr.mxu0 %v668
      %712 = vmatpush1.msra.mxu0 %v667
      %713 = vmatprep.subr.mxu0 %v670
      %714 = vmatpush1.msra.mxu0 %v669
      %715 = vmatprep.subr.mxu0 %v672
      %716 = vmatpush1.msra.mxu0 %v671
      %717 = vmatprep.subr.mxu0 %v674
      %718 = vmatpush1.msra.mxu0 %v673
      %719 = vmatprep.subr.mxu0 %v676
      %720 = vmatpush1.msra.mxu0 %v675
      %721 = vmatprep.subr.mxu0 %v678
      %722 = vmatpush1.msra.mxu0 %v677
      %723 = vmatprep.subr.mxu0 %v680
      %724 = vmatpush1.msra.mxu0 %v679
      %725 = vmatprep.subr.mxu0 %v682
      %726 = vmatpush1.msra.mxu0 %v681
      %727 = vmatprep.subr.mxu0 %v684
      %728 = vmatpush1.msra.mxu0 %v683
      %729 = vmatprep.subr.mxu0 %v686
      %730 = vmatpush1.msra.mxu0 %v685
      %731 = vmatprep.subr.mxu0 0.0
      %732 = vmatpush1.msra.mxu0 0.0
      %733 = vmatprep.subr.mxu0 0.0
      %734 = vmatpush1.msra.mxu0 0.0
      %735 = vmatprep.subr.mxu0 0.0
      %736 = vmatpush1.msra.mxu0 0.0
      %737 = vmatprep.subr.mxu0 0.0
      %738 = vmatpush1.msra.mxu0 0.0
      %739 = vmatprep.subr.mxu0 0.0
      %740 = vmatpush1.msra.mxu0 0.0
      %741 = vmatprep.subr.mxu0 0.0
      %742 = vmatpush1.msra.mxu0 0.0
      %743 = vmatprep.subr.mxu0 0.0
      %744 = vmatpush1.msra.mxu0 0.0
      %745 = vmatprep.subr.mxu0 0.0
      %746 = vmatpush1.msra.mxu0 0.0
      %747 = vmatprep.subr.mxu0 0.0
      %748 = vmatpush1.msra.mxu0 0.0
      %749 = vmatprep.subr.mxu0 0.0
      %750 = vmatpush1.msra.mxu0 0.0
      %751 = vmatprep.subr.mxu0 0.0
      %752 = vmatpush1.msra.mxu0 0.0
      %753 = vmatprep.subr.mxu0 0.0
      %754 = vmatpush1.msra.mxu0 0.0
      %755 = vmatprep.subr.mxu0 0.0
      %756 = vmatpush1.msra.mxu0 0.0
      %757 = vmatprep.subr.mxu0 0.0
      %758 = vmatpush1.msra.mxu0 0.0
      %759 = vmatprep.subr.mxu0 0.0
      %760 = vmatpush1.msra.mxu0 0.0
      %761 = vmatprep.subr.mxu0 0.0
      %762 = vmatpush1.msra.mxu0 0.0
      %763 = vmatprep.mubr.f32.mxu0 0.0
      %764 = vmatmul.mubr.f32.gmra.mrb[0].mxu0 %v636
      %v765 = vpop.f32.mrb[0].mxu0
      %v766 = vadd.f32 %v692, %v765
      %v767 = vpop.f32.mrb[0].mxu0
      %v768 = vadd.f32 %v696, %v767
      %769 = vmatprep.mubr.f32.mxu0 0.0
      %770 = vmatmul.mubr.f32.gmra.mrb[0].mxu0 %v637
      %v771 = vpop.f32.mrb[0].mxu0
      %v772 = vadd.f32 %v692, %v771
      %v773 = vpop.f32.mrb[0].mxu0
      %v774 = vadd.f32 %v696, %v773
      %775 = vmatprep.mubr.f32.mxu0 0.0
      %776 = vmatmul.mubr.f32.gmra.mrb[0].mxu0 %v638
      %v777 = vpop.f32.mrb[0].mxu0
      %v778 = vadd.f32 %v692, %v777
      %v779 = vpop.f32.mrb[0].mxu0
      %v780 = vadd.f32 %v696, %v779
      %781 = vmatprep.mubr.f32.mxu0 0.0
      %782 = vmatmul.mubr.f32.gmra.mrb[0].mxu0 %v639
      %v783 = vpop.f32.mrb[0].mxu0
      %v784 = vadd.f32 %v692, %v783
      %v785 = vpop.f32.mrb[0].mxu0
      %v786 = vadd.f32 %v696, %v785
      %787 = vmatprep.mubr.f32.mxu0 0.0
      %788 = vmatmul.mubr.f32.gmra.mrb[0].mxu0 %v640
      %v789 = vpop.f32.mrb[0].mxu0
      %v790 = vadd.f32 %v692, %v789
      %v791 = vpop.f32.mrb[0].mxu0
      %v792 = vadd.f32 %v696, %v791
      %793 = vmatprep.mubr.f32.mxu0 0.0
      %794 = vmatmul.mubr.f32.gmra.mrb[0].mxu0 %v641
      %v795 = vpop.f32.mrb[0].mxu0
      %v796 = vadd.f32 %v692, %v795
      %v797 = vpop.f32.mrb[0].mxu0
      %v798 = vadd.f32 %v696, %v797
      %799 = vmatprep.mubr.f32.mxu0 0.0
      %800 = vmatmul.mubr.f32.gmra.mrb[0].mxu0 %v642
      %v801 = vpop.f32.mrb[0].mxu0
      %v802 = vadd.f32 %v692, %v801
      %v803 = vpop.f32.mrb[0].mxu0
      %v804 = vadd.f32 %v696, %v803
      %805 = vmatprep.mubr.f32.mxu0 0.0
      %806 = vmatmul.mubr.f32.gmra.mrb[0].mxu0 %v643
      %v807 = vpop.f32.mrb[0].mxu0
      %v808 = vadd.f32 %v692, %v807
      %v809 = vpop.f32.mrb[0].mxu0
      %v810 = vadd.f32 %v696, %v809
      %811 = vmatprep.mubr.f32.mxu0 0.0
      %812 = vmatmul.mubr.f32.gmra.mrb[0].mxu0 %v644
      %v813 = vpop.f32.mrb[0].mxu0
      %v814 = vadd.f32 %v692, %v813
      %v815 = vpop.f32.mrb[0].mxu0
      %v816 = vadd.f32 %v696, %v815
      %817 = vmatprep.mubr.f32.mxu0 0.0
      %818 = vmatmul.mubr.f32.gmra.mrb[0].mxu0 %v645
      %v819 = vpop.f32.mrb[0].mxu0
      %v820 = vadd.f32 %v692, %v819
      %v821 = vpop.f32.mrb[0].mxu0
      %v822 = vadd.f32 %v696, %v821
      %823 = vmatprep.mubr.f32.mxu0 0.0
      %824 = vmatmul.mubr.f32.gmra.mrb[0].mxu0 %v646
      %v825 = vpop.f32.mrb[0].mxu0
      %v826 = vadd.f32 %v692, %v825
      %v827 = vpop.f32.mrb[0].mxu0
      %v828 = vadd.f32 %v696, %v827
      %829 = vmatprep.mubr.f32.mxu0 0.0
      %830 = vmatmul.mubr.f32.gmra.mrb[0].mxu0 %v647
      %v831 = vpop.f32.mrb[0].mxu0
      %v832 = vadd.f32 %v692, %v831
      %v833 = vpop.f32.mrb[0].mxu0
      %v834 = vadd.f32 %v696, %v833
      %835 = vmatprep.mubr.f32.mxu0 0.0
      %836 = vmatmul.mubr.f32.gmra.mrb[0].mxu0 %v648
      %v837 = vpop.f32.mrb[0].mxu0
      %v838 = vadd.f32 %v692, %v837
      %v839 = vpop.f32.mrb[0].mxu0
      %v840 = vadd.f32 %v696, %v839
      %841 = vmatprep.mubr.f32.mxu0 0.0
      %842 = vmatmul.mubr.f32.gmra.mrb[0].mxu0 %v649
      %v843 = vpop.f32.mrb[0].mxu0
      %v844 = vadd.f32 %v692, %v843
      %v845 = vpop.f32.mrb[0].mxu0
      %v846 = vadd.f32 %v696, %v845
      %847 = vmatprep.mubr.f32.mxu0 0.0
      %848 = vmatmul.mubr.f32.gmra.mrb[0].mxu0 %v650
      %v849 = vpop.f32.mrb[0].mxu0
      %v850 = vadd.f32 %v692, %v849
      %v851 = vpop.f32.mrb[0].mxu0
      %v852 = vadd.f32 %v696, %v851
      %853 = vmatprep.mubr.f32.mxu0 0.0
      %854 = vmatmul.mubr.f32.gmra.mrb[0].mxu0 %v651
      %v855 = vpop.f32.mrb[0].mxu0
      %v856 = vadd.f32 %v692, %v855
      %v857 = vpop.f32.mrb[0].mxu0
      %v858 = vadd.f32 %v696, %v857
      %859 = vmatprep.mubr.f32.mxu0 0.0
      %860 = vmatmul.mubr.f32.gmra.mrb[0].mxu0 %v652
      %v861 = vpop.f32.mrb[0].mxu0
      %v862 = vadd.f32 %v692, %v861
      %v863 = vpop.f32.mrb[0].mxu0
      %v864 = vadd.f32 %v696, %v863
      %865 = vmatprep.mubr.f32.mxu0 0.0
      %866 = vmatmul.mubr.f32.gmra.mrb[0].mxu0 %v653
      %v867 = vpop.f32.mrb[0].mxu0
      %v868 = vadd.f32 %v692, %v867
      %v869 = vpop.f32.mrb[0].mxu0
      %v870 = vadd.f32 %v696, %v869
      %871 = vmatprep.mubr.f32.mxu0 0.0
      %872 = vmatmul.mubr.f32.gmra.mrb[0].mxu0 %v654
      %v873 = vpop.f32.mrb[0].mxu0
      %v874 = vadd.f32 %v692, %v873
      %v875 = vpop.f32.mrb[0].mxu0
      %v876 = vadd.f32 %v696, %v875
      %877 = vdwg.mxu0
      %v878 = vmax.f32 %v766, 0.0
      %v879 = vmax.f32 %v768, 0.0
      %v880 = vmax.f32 %v772, 0.0
      %v881 = vmax.f32 %v774, 0.0
      %v882 = vmax.f32 %v778, 0.0
      %v883 = vmax.f32 %v780, 0.0
      %v884 = vmax.f32 %v784, 0.0
      %v885 = vmax.f32 %v786, 0.0
      %v886 = vmax.f32 %v790, 0.0
      %v887 = vmax.f32 %v792, 0.0
      %v888 = vmax.f32 %v796, 0.0
      %v889 = vmax.f32 %v798, 0.0
      %v890 = vmax.f32 %v802, 0.0
      %v891 = vmax.f32 %v804, 0.0
      %v892 = vmax.f32 %v808, 0.0
      %v893 = vmax.f32 %v810, 0.0
      %v894 = vmax.f32 %v814, 0.0
      %v895 = vmax.f32 %v816, 0.0
      %v896 = vmax.f32 %v820, 0.0
      %v897 = vmax.f32 %v822, 0.0
      %v898 = vmax.f32 %v826, 0.0
      %v899 = vmax.f32 %v828, 0.0
      %v900 = vmax.f32 %v832, 0.0
      %v901 = vmax.f32 %v834, 0.0
      %v902 = vmax.f32 %v838, 0.0
      %v903 = vmax.f32 %v840, 0.0
      %v904 = vmax.f32 %v844, 0.0
      %v905 = vmax.f32 %v846, 0.0
      %v906 = vmax.f32 %v850, 0.0
      %v907 = vmax.f32 %v852, 0.0
      %v908 = vmax.f32 %v856, 0.0
      %v909 = vmax.f32 %v858, 0.0
      %v910 = vmax.f32 %v862, 0.0
      %v911 = vmax.f32 %v864, 0.0
      %v912 = vmax.f32 %v868, 0.0
      %v913 = vmax.f32 %v870, 0.0
      %v914 = vmax.f32 %v874, 0.0
      %v915 = vmax.f32 %v876, 0.0
      %v916 = vld [vmem:[%s5] sm:$0xff]
      %v917 = vld [vmem:[%s5 + $0x8] sm:$0xff]
      %v918 = vld [vmem:[%s5 + $0x10] sm:$0xff]
      %v919 = vld [vmem:[%s5 + $0x18] sm:$0xff]
      %v920 = vld [vmem:[%s5 + $0x20] sm:$0xff]
      %v921 = vld [vmem:[%s5 + $0x28] sm:$0xff]
      %v922 = vld [vmem:[%s5 + $0x30] sm:$0xff]
      %v923 = vld [vmem:[%s5 + $0x38] sm:$0xff]
      %v924 = vld [vmem:[%s5 + $0x40] sm:$0xff]
      %v925 = vld [vmem:[%s5 + $0x48] sm:$0xff]
      %v926 = vld [vmem:[%s5 + $0x50] sm:$0xff]
      %v927 = vld [vmem:[%s5 + $0x58] sm:$0xff]
      %v928 = vld [vmem:[%s5 + $0x60] sm:$0xff]
      %v929 = vld [vmem:[%s5 + $0x68] sm:$0xff]
      %v930 = vld [vmem:[%s5 + $0x70] sm:$0xff]
      %v931 = vld [vmem:[%s5 + $0x78] sm:$0xff]
      %v932 = vld [vmem:[%s5 + $0x80] sm:$0xff]
      %v933 = vld [vmem:[%s5 + $0x88] sm:$0xff]
      %v934 = vld [vmem:[%s5 + $0x90] sm:$0xff]
      %v935 = vld [vmem:[%s5 + $0x98] sm:$0xff]
      %v936 = vld [vmem:[%s5 + $0xa0] sm:$0xff]
      %v937 = vld [vmem:[%s5 + $0xa8] sm:$0xff]
      %v938 = vld [vmem:[%s5 + $0xb0] sm:$0xff]
      %v939 = vld [vmem:[%s5 + $0xb8] sm:$0xff]
      %v940 = vld [vmem:[%s5 + $0xc0] sm:$0xff]
      %v941 = vld [vmem:[%s5 + $0xc8] sm:$0xff]
      %v942 = vld [vmem:[%s5 + $0xd0] sm:$0xff]
      %v943 = vld [vmem:[%s5 + $0xd8] sm:$0xff]
      %v944 = vld [vmem:[%s5 + $0xe0] sm:$0xff]
      %v945 = vld [vmem:[%s5 + $0xe8] sm:$0xff]
      %v946 = vld [vmem:[%s5 + $0xf0] sm:$0xff]
      %v947 = vld [vmem:[%s5 + $0xf8] sm:$0xff]
      %v948 = vld [vmem:[%s6] sm:$0x1]
      %v950 = vlaneseq
      %v951 = vshrl.u32 %v950, 7
      %v952 = vsub.s32 0, %v951
      %v953 = vrot.slane %v948, %v952
      %955 = vmatprep.subr.mxu0 0.0
      %956 = vmatpush1.msra.mxu0 %v916
      %957 = vmatprep.subr.mxu0 0.0
      %958 = vmatpush1.msra.mxu0 %v917
      %959 = vmatprep.subr.mxu0 0.0
      %960 = vmatpush1.msra.mxu0 %v918
      %961 = vmatprep.subr.mxu0 0.0
      %962 = vmatpush1.msra.mxu0 %v919
      %963 = vmatprep.subr.mxu0 0.0
      %964 = vmatpush1.msra.mxu0 %v920
      %965 = vmatprep.subr.mxu0 0.0
      %966 = vmatpush1.msra.mxu0 %v921
      %967 = vmatprep.subr.mxu0 0.0
      %968 = vmatpush1.msra.mxu0 %v922
      %969 = vmatprep.subr.mxu0 0.0
      %970 = vmatpush1.msra.mxu0 %v923
      %971 = vmatprep.subr.mxu0 0.0
      %972 = vmatpush1.msra.mxu0 %v924
      %973 = vmatprep.subr.mxu0 0.0
      %974 = vmatpush1.msra.mxu0 %v925
      %975 = vmatprep.subr.mxu0 0.0
      %976 = vmatpush1.msra.mxu0 %v926
      %977 = vmatprep.subr.mxu0 0.0
      %978 = vmatpush1.msra.mxu0 %v927
      %979 = vmatprep.subr.mxu0 0.0
      %980 = vmatpush1.msra.mxu0 %v928
      %981 = vmatprep.subr.mxu0 0.0
      %982 = vmatpush1.msra.mxu0 %v929
      %983 = vmatprep.subr.mxu0 0.0
      %984 = vmatpush1.msra.mxu0 %v930
      %985 = vmatprep.subr.mxu0 0.0
      %986 = vmatpush1.msra.mxu0 %v931
      %987 = vmatprep.subr.mxu0 0.0
      %988 = vmatpush1.msra.mxu0 %v932
      %989 = vmatprep.subr.mxu0 0.0
      %990 = vmatpush1.msra.mxu0 %v933
      %991 = vmatprep.subr.mxu0 0.0
      %992 = vmatpush1.msra.mxu0 %v934
      %993 = vmatprep.subr.mxu0 0.0
      %994 = vmatpush1.msra.mxu0 %v935
      %995 = vmatprep.subr.mxu0 0.0
      %996 = vmatpush1.msra.mxu0 %v936
      %997 = vmatprep.subr.mxu0 0.0
      %998 = vmatpush1.msra.mxu0 %v937
      %999 = vmatprep.subr.mxu0 0.0
      %1000 = vmatpush1.msra.mxu0 %v938
      %1001 = vmatprep.subr.mxu0 0.0
      %1002 = vmatpush1.msra.mxu0 %v939
      %1003 = vmatprep.subr.mxu0 0.0
      %1004 = vmatpush1.msra.mxu0 %v940
      %1005 = vmatprep.subr.mxu0 0.0
      %1006 = vmatpush1.msra.mxu0 %v941
      %1007 = vmatprep.subr.mxu0 0.0
      %1008 = vmatpush1.msra.mxu0 %v942
      %1009 = vmatprep.subr.mxu0 0.0
      %1010 = vmatpush1.msra.mxu0 %v943
      %1011 = vmatprep.subr.mxu0 0.0
      %1012 = vmatpush1.msra.mxu0 %v944
      %1013 = vmatprep.subr.mxu0 0.0
      %1014 = vmatpush1.msra.mxu0 %v945
      %1015 = vmatprep.subr.mxu0 0.0
      %1016 = vmatpush1.msra.mxu0 %v946
      %1017 = vmatprep.subr.mxu0 0.0
      %1018 = vmatpush1.msra.mxu0 %v947
      %1019 = vmatprep.mubr.f32.mxu0 %v879
      %1020 = vmatmul.mubr.f32.gmra.mrb[0].mxu0 %v878
      %v1021 = vpop.f32.mrb[0].mxu0
      %v1022 = vadd.f32 %v953, %v1021
      %v1023 = vpop.f32.mrb[0].mxu0
      %1024 = vmatprep.mubr.f32.mxu0 %v881
      %1025 = vmatmul.mubr.f32.gmra.mrb[0].mxu0 %v880
      %v1026 = vpop.f32.mrb[0].mxu0
      %v1027 = vadd.f32 %v953, %v1026
      %v1028 = vpop.f32.mrb[0].mxu0
      %1029 = vmatprep.mubr.f32.mxu0 %v883
      %1030 = vmatmul.mubr.f32.gmra.mrb[0].mxu0 %v882
      %v1031 = vpop.f32.mrb[0].mxu0
      %v1032 = vadd.f32 %v953, %v1031
      %v1033 = vpop.f32.mrb[0].mxu0
      %1034 = vmatprep.mubr.f32.mxu0 %v885
      %1035 = vmatmul.mubr.f32.gmra.mrb[0].mxu0 %v884
      %v1036 = vpop.f32.mrb[0].mxu0
      %v1037 = vadd.f32 %v953, %v1036
      %v1038 = vpop.f32.mrb[0].mxu0
      %1039 = vmatprep.mubr.f32.mxu0 %v887
      %1040 = vmatmul.mubr.f32.gmra.mrb[0].mxu0 %v886
      %v1041 = vpop.f32.mrb[0].mxu0
      %v1042 = vadd.f32 %v953, %v1041
      %v1043 = vpop.f32.mrb[0].mxu0
      %1044 = vmatprep.mubr.f32.mxu0 %v889
      %1045 = vmatmul.mubr.f32.gmra.mrb[0].mxu0 %v888
      %v1046 = vpop.f32.mrb[0].mxu0
      %v1047 = vadd.f32 %v953, %v1046
      %v1048 = vpop.f32.mrb[0].mxu0
      %1049 = vmatprep.mubr.f32.mxu0 %v891
      %1050 = vmatmul.mubr.f32.gmra.mrb[0].mxu0 %v890
      %v1051 = vpop.f32.mrb[0].mxu0
      %v1052 = vadd.f32 %v953, %v1051
      %v1053 = vpop.f32.mrb[0].mxu0
      %1054 = vmatprep.mubr.f32.mxu0 %v893
      %1055 = vmatmul.mubr.f32.gmra.mrb[0].mxu0 %v892
      %v1056 = vpop.f32.mrb[0].mxu0
      %v1057 = vadd.f32 %v953, %v1056
      %v1058 = vpop.f32.mrb[0].mxu0
      %1059 = vmatprep.mubr.f32.mxu0 %v895
      %1060 = vmatmul.mubr.f32.gmra.mrb[0].mxu0 %v894
      %v1061 = vpop.f32.mrb[0].mxu0
      %v1062 = vadd.f32 %v953, %v1061
      %v1063 = vpop.f32.mrb[0].mxu0
      %1064 = vmatprep.mubr.f32.mxu0 %v897
      %1065 = vmatmul.mubr.f32.gmra.mrb[0].mxu0 %v896
      %v1066 = vpop.f32.mrb[0].mxu0
      %v1067 = vadd.f32 %v953, %v1066
      %v1068 = vpop.f32.mrb[0].mxu0
      %1069 = vmatprep.mubr.f32.mxu0 %v899
      %1070 = vmatmul.mubr.f32.gmra.mrb[0].mxu0 %v898
      %v1071 = vpop.f32.mrb[0].mxu0
      %v1072 = vadd.f32 %v953, %v1071
      %v1073 = vpop.f32.mrb[0].mxu0
      %1074 = vmatprep.mubr.f32.mxu0 %v901
      %1075 = vmatmul.mubr.f32.gmra.mrb[0].mxu0 %v900
      %v1076 = vpop.f32.mrb[0].mxu0
      %v1077 = vadd.f32 %v953, %v1076
      %v1078 = vpop.f32.mrb[0].mxu0
      %1079 = vmatprep.mubr.f32.mxu0 %v903
      %1080 = vmatmul.mubr.f32.gmra.mrb[0].mxu0 %v902
      %v1081 = vpop.f32.mrb[0].mxu0
      %v1082 = vadd.f32 %v953, %v1081
      %v1083 = vpop.f32.mrb[0].mxu0
      %1084 = vmatprep.mubr.f32.mxu0 %v905
      %1085 = vmatmul.mubr.f32.gmra.mrb[0].mxu0 %v904
      %v1086 = vpop.f32.mrb[0].mxu0
      %v1087 = vadd.f32 %v953, %v1086
      %v1088 = vpop.f32.mrb[0].mxu0
      %1089 = vmatprep.mubr.f32.mxu0 %v907
      %1090 = vmatmul.mubr.f32.gmra.mrb[0].mxu0 %v906
      %v1091 = vpop.f32.mrb[0].mxu0
      %v1092 = vadd.f32 %v953, %v1091
      %v1093 = vpop.f32.mrb[0].mxu0
      %1094 = vmatprep.mubr.f32.mxu0 %v909
      %1095 = vmatmul.mubr.f32.gmra.mrb[0].mxu0 %v908
      %v1096 = vpop.f32.mrb[0].mxu0
      %v1097 = vadd.f32 %v953, %v1096
      %v1098 = vpop.f32.mrb[0].mxu0
      %1099 = vmatprep.mubr.f32.mxu0 %v911
      %1100 = vmatmul.mubr.f32.gmra.mrb[0].mxu0 %v910
      %v1101 = vpop.f32.mrb[0].mxu0
      %v1102 = vadd.f32 %v953, %v1101
      %v1103 = vpop.f32.mrb[0].mxu0
      %1104 = vmatprep.mubr.f32.mxu0 %v913
      %1105 = vmatmul.mubr.f32.gmra.mrb[0].mxu0 %v912
      %v1106 = vpop.f32.mrb[0].mxu0
      %v1107 = vadd.f32 %v953, %v1106
      %v1108 = vpop.f32.mrb[0].mxu0
      %1109 = vmatprep.mubr.f32.mxu0 %v915
      %1110 = vmatmul.mubr.f32.gmra.mrb[0].mxu0 %v914
      %v1111 = vpop.f32.mrb[0].mxu0
      %v1112 = vadd.f32 %v953, %v1111
      %v1113 = vpop.f32.mrb[0].mxu0
      %1114 = vdwg.mxu0
      %v1115 = vmax.f32 %v1022, 0.0
      %v1116 = vmax.f32 %v1027, 0.0
      %v1117 = vmax.f32 %v1032, 0.0
      %v1118 = vmax.f32 %v1037, 0.0
      %v1119 = vmax.f32 %v1042, 0.0
      %v1120 = vmax.f32 %v1047, 0.0
      %v1121 = vmax.f32 %v1052, 0.0
      %v1122 = vmax.f32 %v1057, 0.0
      %v1123 = vmax.f32 %v1062, 0.0
      %v1124 = vmax.f32 %v1067, 0.0
      %v1125 = vmax.f32 %v1072, 0.0
      %v1126 = vmax.f32 %v1077, 0.0
      %v1127 = vmax.f32 %v1082, 0.0
      %v1128 = vmax.f32 %v1087, 0.0
      %v1129 = vmax.f32 %v1092, 0.0
      %v1130 = vmax.f32 %v1097, 0.0
      %v1131 = vmax.f32 %v1102, 0.0
      %v1132 = vmax.f32 %v1107, 0.0
      %v1133 = vmax.f32 %v1112, 0.0
      %v1134 = vld [vmem:[%s7] sm:$0xff]
      %v1135 = vld [vmem:[%s7 + $0x8] sm:$0xff]
      %v1136 = vld [vmem:[%s7 + $0x10] sm:$0xff]
      %v1137 = vld [vmem:[%s7 + $0x18] sm:$0xff]
      %v1138 = vld [vmem:[%s7 + $0x20] sm:$0xff]
      %v1139 = vld [vmem:[%s7 + $0x28] sm:$0xff]
      %v1140 = vld [vmem:[%s7 + $0x30] sm:$0xff]
      %v1141 = vld [vmem:[%s7 + $0x38] sm:$0xff]
      %v1142 = vld [vmem:[%s7 + $0x40] sm:$0xff]
      %v1143 = vld [vmem:[%s7 + $0x48] sm:$0xff]
      %v1144 = vld [vmem:[%s7 + $0x50] sm:$0xff]
      %v1145 = vld [vmem:[%s7 + $0x58] sm:$0xff]
      %v1146 = vld [vmem:[%s7 + $0x60] sm:$0xff]
      %v1147 = vld [vmem:[%s7 + $0x68] sm:$0xff]
      %v1148 = vld [vmem:[%s7 + $0x70] sm:$0xff]
      %v1149 = vld [vmem:[%s7 + $0x78] sm:$0xff]
      %v1150 = vld [vmem:[%s8] sm:$0x1]
      %v1152 = vlaneseq
      %v1153 = vshrl.u32 %v1152, 7
      %v1154 = vsub.s32 0, %v1153
      %v1155 = vrot.slane %v1150, %v1154
      %1157 = vmatprep.subr.mxu0 0.0
      %1158 = vmatpush1.msra.mxu0 %v1134
      %1159 = vmatprep.subr.mxu0 0.0
      %1160 = vmatpush1.msra.mxu0 %v1135
      %1161 = vmatprep.subr.mxu0 0.0
      %1162 = vmatpush1.msra.mxu0 %v1136
      %1163 = vmatprep.subr.mxu0 0.0
      %1164 = vmatpush1.msra.mxu0 %v1137
      %1165 = vmatprep.subr.mxu0 0.0
      %1166 = vmatpush1.msra.mxu0 %v1138
      %1167 = vmatprep.subr.mxu0 0.0
      %1168 = vmatpush1.msra.mxu0 %v1139
      %1169 = vmatprep.subr.mxu0 0.0
      %1170 = vmatpush1.msra.mxu0 %v1140
      %1171 = vmatprep.subr.mxu0 0.0
      %1172 = vmatpush1.msra.mxu0 %v1141
      %1173 = vmatprep.subr.mxu0 0.0
      %1174 = vmatpush1.msra.mxu0 %v1142
      %1175 = vmatprep.subr.mxu0 0.0
      %1176 = vmatpush1.msra.mxu0 %v1143
      %1177 = vmatprep.subr.mxu0 0.0
      %1178 = vmatpush1.msra.mxu0 %v1144
      %1179 = vmatprep.subr.mxu0 0.0
      %1180 = vmatpush1.msra.mxu0 %v1145
      %1181 = vmatprep.subr.mxu0 0.0
      %1182 = vmatpush1.msra.mxu0 %v1146
      %1183 = vmatprep.subr.mxu0 0.0
      %1184 = vmatpush1.msra.mxu0 %v1147
      %1185 = vmatprep.subr.mxu0 0.0
      %1186 = vmatpush1.msra.mxu0 %v1148
      %1187 = vmatprep.subr.mxu0 0.0
      %1188 = vmatpush1.msra.mxu0 %v1149
      %1189 = vmatprep.subr.mxu0 0.0
      %1190 = vmatpush1.msra.mxu0 0.0
      %1191 = vmatprep.subr.mxu0 0.0
      %1192 = vmatpush1.msra.mxu0 0.0
      %1193 = vmatprep.subr.mxu0 0.0
      %1194 = vmatpush1.msra.mxu0 0.0
      %1195 = vmatprep.subr.mxu0 0.0
      %1196 = vmatpush1.msra.mxu0 0.0
      %1197 = vmatprep.subr.mxu0 0.0
      %1198 = vmatpush1.msra.mxu0 0.0
      %1199 = vmatprep.subr.mxu0 0.0
      %1200 = vmatpush1.msra.mxu0 0.0
      %1201 = vmatprep.subr.mxu0 0.0
      %1202 = vmatpush1.msra.mxu0 0.0
      %1203 = vmatprep.subr.mxu0 0.0
      %1204 = vmatpush1.msra.mxu0 0.0
      %1205 = vmatprep.subr.mxu0 0.0
      %1206 = vmatpush1.msra.mxu0 0.0
      %1207 = vmatprep.subr.mxu0 0.0
      %1208 = vmatpush1.msra.mxu0 0.0
      %1209 = vmatprep.subr.mxu0 0.0
      %1210 = vmatpush1.msra.mxu0 0.0
      %1211 = vmatprep.subr.mxu0 0.0
      %1212 = vmatpush1.msra.mxu0 0.0
      %1213 = vmatprep.subr.mxu0 0.0
      %1214 = vmatpush1.msra.mxu0 0.0
      %1215 = vmatprep.subr.mxu0 0.0
      %1216 = vmatpush1.msra.mxu0 0.0
      %1217 = vmatprep.subr.mxu0 0.0
      %1218 = vmatpush1.msra.mxu0 0.0
      %1219 = vmatprep.subr.mxu0 0.0
      %1220 = vmatpush1.msra.mxu0 0.0
      %1221 = vmatprep.mubr.f32.mxu0 0.0
      %1222 = vmatmul.mubr.f32.gmra.mrb[0].mxu0 %v1115
      %v1223 = vpop.f32.mrb[0].mxu0
      %v1224 = vadd.f32 %v1155, %v1223
      %v1225 = vpop.f32.mrb[0].mxu0
      %1226 = vmatprep.mubr.f32.mxu0 0.0
      %1227 = vmatmul.mubr.f32.gmra.mrb[0].mxu0 %v1116
      %v1228 = vpop.f32.mrb[0].mxu0
      %v1229 = vadd.f32 %v1155, %v1228
      %v1230 = vpop.f32.mrb[0].mxu0
      %1231 = vmatprep.mubr.f32.mxu0 0.0
      %1232 = vmatmul.mubr.f32.gmra.mrb[0].mxu0 %v1117
      %v1233 = vpop.f32.mrb[0].mxu0
      %v1234 = vadd.f32 %v1155, %v1233
      %v1235 = vpop.f32.mrb[0].mxu0
      %1236 = vmatprep.mubr.f32.mxu0 0.0
      %1237 = vmatmul.mubr.f32.gmra.mrb[0].mxu0 %v1118
      %v1238 = vpop.f32.mrb[0].mxu0
      %v1239 = vadd.f32 %v1155, %v1238
      %v1240 = vpop.f32.mrb[0].mxu0
      %1241 = vmatprep.mubr.f32.mxu0 0.0
      %1242 = vmatmul.mubr.f32.gmra.mrb[0].mxu0 %v1119
      %v1243 = vpop.f32.mrb[0].mxu0
      %v1244 = vadd.f32 %v1155, %v1243
      %v1245 = vpop.f32.mrb[0].mxu0
      %1246 = vmatprep.mubr.f32.mxu0 0.0
      %1247 = vmatmul.mubr.f32.gmra.mrb[0].mxu0 %v1120
      %v1248 = vpop.f32.mrb[0].mxu0
      %v1249 = vadd.f32 %v1155, %v1248
      %v1250 = vpop.f32.mrb[0].mxu0
      %1251 = vmatprep.mubr.f32.mxu0 0.0
      %1252 = vmatmul.mubr.f32.gmra.mrb[0].mxu0 %v1121
      %v1253 = vpop.f32.mrb[0].mxu0
      %v1254 = vadd.f32 %v1155, %v1253
      %v1255 = vpop.f32.mrb[0].mxu0
      %1256 = vmatprep.mubr.f32.mxu0 0.0
      %1257 = vmatmul.mubr.f32.gmra.mrb[0].mxu0 %v1122
      %v1258 = vpop.f32.mrb[0].mxu0
      %v1259 = vadd.f32 %v1155, %v1258
      %v1260 = vpop.f32.mrb[0].mxu0
      %1261 = vmatprep.mubr.f32.mxu0 0.0
      %1262 = vmatmul.mubr.f32.gmra.mrb[0].mxu0 %v1123
      %v1263 = vpop.f32.mrb[0].mxu0
      %v1264 = vadd.f32 %v1155, %v1263
      %v1265 = vpop.f32.mrb[0].mxu0
      %1266 = vmatprep.mubr.f32.mxu0 0.0
      %1267 = vmatmul.mubr.f32.gmra.mrb[0].mxu0 %v1124
      %v1268 = vpop.f32.mrb[0].mxu0
      %v1269 = vadd.f32 %v1155, %v1268
      %v1270 = vpop.f32.mrb[0].mxu0
      %1271 = vmatprep.mubr.f32.mxu0 0.0
      %1272 = vmatmul.mubr.f32.gmra.mrb[0].mxu0 %v1125
      %v1273 = vpop.f32.mrb[0].mxu0
      %v1274 = vadd.f32 %v1155, %v1273
      %v1275 = vpop.f32.mrb[0].mxu0
      %1276 = vmatprep.mubr.f32.mxu0 0.0
      %1277 = vmatmul.mubr.f32.gmra.mrb[0].mxu0 %v1126
      %v1278 = vpop.f32.mrb[0].mxu0
      %v1279 = vadd.f32 %v1155, %v1278
      %v1280 = vpop.f32.mrb[0].mxu0
      %1281 = vmatprep.mubr.f32.mxu0 0.0
      %1282 = vmatmul.mubr.f32.gmra.mrb[0].mxu0 %v1127
      %v1283 = vpop.f32.mrb[0].mxu0
      %v1284 = vadd.f32 %v1155, %v1283
      %v1285 = vpop.f32.mrb[0].mxu0
      %1286 = vmatprep.mubr.f32.mxu0 0.0
      %1287 = vmatmul.mubr.f32.gmra.mrb[0].mxu0 %v1128
      %v1288 = vpop.f32.mrb[0].mxu0
      %v1289 = vadd.f32 %v1155, %v1288
      %v1290 = vpop.f32.mrb[0].mxu0
      %1291 = vmatprep.mubr.f32.mxu0 0.0
      %1292 = vmatmul.mubr.f32.gmra.mrb[0].mxu0 %v1129
      %v1293 = vpop.f32.mrb[0].mxu0
      %v1294 = vadd.f32 %v1155, %v1293
      %v1295 = vpop.f32.mrb[0].mxu0
      %1296 = vmatprep.mubr.f32.mxu0 0.0
      %1297 = vmatmul.mubr.f32.gmra.mrb[0].mxu0 %v1130
      %v1298 = vpop.f32.mrb[0].mxu0
      %v1299 = vadd.f32 %v1155, %v1298
      %v1300 = vpop.f32.mrb[0].mxu0
      %1301 = vmatprep.mubr.f32.mxu0 0.0
      %1302 = vmatmul.mubr.f32.gmra.mrb[0].mxu0 %v1131
      %v1303 = vpop.f32.mrb[0].mxu0
      %v1304 = vadd.f32 %v1155, %v1303
      %v1305 = vpop.f32.mrb[0].mxu0
      %1306 = vmatprep.mubr.f32.mxu0 0.0
      %1307 = vmatmul.mubr.f32.gmra.mrb[0].mxu0 %v1132
      %v1308 = vpop.f32.mrb[0].mxu0
      %v1309 = vadd.f32 %v1155, %v1308
      %v1310 = vpop.f32.mrb[0].mxu0
      %1311 = vmatprep.mubr.f32.mxu0 0.0
      %1312 = vmatmul.mubr.f32.gmra.mrb[0].mxu0 %v1133
      %v1313 = vpop.f32.mrb[0].mxu0
      %v1314 = vadd.f32 %v1155, %v1313
      %v1315 = vpop.f32.mrb[0].mxu0
      %1316 = vdwg.mxu0
      %v1317 = vmax.f32 %v1224, 0.0
      %v1318 = vmax.f32 %v1229, 0.0
      %v1319 = vmax.f32 %v1234, 0.0
      %v1320 = vmax.f32 %v1239, 0.0
      %v1321 = vmax.f32 %v1244, 0.0
      %v1322 = vmax.f32 %v1249, 0.0
      %v1323 = vmax.f32 %v1254, 0.0
      %v1324 = vmax.f32 %v1259, 0.0
      %v1325 = vmax.f32 %v1264, 0.0
      %v1326 = vmax.f32 %v1269, 0.0
      %v1327 = vmax.f32 %v1274, 0.0
      %v1328 = vmax.f32 %v1279, 0.0
      %v1329 = vmax.f32 %v1284, 0.0
      %v1330 = vmax.f32 %v1289, 0.0
      %v1331 = vmax.f32 %v1294, 0.0
      %v1332 = vmax.f32 %v1299, 0.0
      %v1333 = vmax.f32 %v1304, 0.0
      %v1334 = vmax.f32 %v1309, 0.0
      %v1335 = vmax.f32 %v1314, 0.0
      %v1336 = vld [vmem:[%s9] sm:$0xff]
      %v1337 = vld [vmem:[%s9 + $0x8] sm:$0xff]
      %v1338 = vld [vmem:[%s9 + $0x10] sm:$0xff]
      %v1339 = vld [vmem:[%s9 + $0x18] sm:$0xff]
      %v1340 = vld [vmem:[%s9 + $0x20] sm:$0xff]
      %v1341 = vld [vmem:[%s9 + $0x28] sm:$0xff]
      %v1342 = vld [vmem:[%s9 + $0x30] sm:$0xff]
      %v1343 = vld [vmem:[%s9 + $0x38] sm:$0xff]
      %v1344 = vld [vmem:[%s9 + $0x40] sm:$0xff]
      %v1345 = vld [vmem:[%s9 + $0x48] sm:$0xff]
      %v1346 = vld [vmem:[%s9 + $0x50] sm:$0xff]
      %v1347 = vld [vmem:[%s9 + $0x58] sm:$0xff]
      %v1348 = vld [vmem:[%s9 + $0x60] sm:$0xff]
      %v1349 = vld [vmem:[%s9 + $0x68] sm:$0xff]
      %v1350 = vld [vmem:[%s9 + $0x70] sm:$0xff]
      %v1351 = vld [vmem:[%s9 + $0x78] sm:$0xff]
      %v1352 = vld [vmem:[%s10] sm:$0x1]
      %v1354 = vlaneseq
      %v1355 = vshrl.u32 %v1354, 7
      %v1356 = vsub.s32 0, %v1355
      %v1357 = vrot.slane %v1352, %v1356
      %1359 = vmatprep.subr.mxu0 0.0
      %1360 = vmatpush1.msra.mxu0 %v1336
      %1361 = vmatprep.subr.mxu0 0.0
      %1362 = vmatpush1.msra.mxu0 %v1337
      %1363 = vmatprep.subr.mxu0 0.0
      %1364 = vmatpush1.msra.mxu0 %v1338
      %1365 = vmatprep.subr.mxu0 0.0
      %1366 = vmatpush1.msra.mxu0 %v1339
      %1367 = vmatprep.subr.mxu0 0.0
      %1368 = vmatpush1.msra.mxu0 %v1340
      %1369 = vmatprep.subr.mxu0 0.0
      %1370 = vmatpush1.msra.mxu0 %v1341
      %1371 = vmatprep.subr.mxu0 0.0
      %1372 = vmatpush1.msra.mxu0 %v1342
      %1373 = vmatprep.subr.mxu0 0.0
      %1374 = vmatpush1.msra.mxu0 %v1343
      %1375 = vmatprep.subr.mxu0 0.0
      %1376 = vmatpush1.msra.mxu0 %v1344
      %1377 = vmatprep.subr.mxu0 0.0
      %1378 = vmatpush1.msra.mxu0 %v1345
      %1379 = vmatprep.subr.mxu0 0.0
      %1380 = vmatpush1.msra.mxu0 %v1346
      %1381 = vmatprep.subr.mxu0 0.0
      %1382 = vmatpush1.msra.mxu0 %v1347
      %1383 = vmatprep.subr.mxu0 0.0
      %1384 = vmatpush1.msra.mxu0 %v1348
      %1385 = vmatprep.subr.mxu0 0.0
      %1386 = vmatpush1.msra.mxu0 %v1349
      %1387 = vmatprep.subr.mxu0 0.0
      %1388 = vmatpush1.msra.mxu0 %v1350
      %1389 = vmatprep.subr.mxu0 0.0
      %1390 = vmatpush1.msra.mxu0 %v1351
      %1391 = vmatprep.subr.mxu0 0.0
      %1392 = vmatpush1.msra.mxu0 0.0
      %1393 = vmatprep.subr.mxu0 0.0
      %1394 = vmatpush1.msra.mxu0 0.0
      %1395 = vmatprep.subr.mxu0 0.0
      %1396 = vmatpush1.msra.mxu0 0.0
      %1397 = vmatprep.subr.mxu0 0.0
      %1398 = vmatpush1.msra.mxu0 0.0
      %1399 = vmatprep.subr.mxu0 0.0
      %1400 = vmatpush1.msra.mxu0 0.0
      %1401 = vmatprep.subr.mxu0 0.0
      %1402 = vmatpush1.msra.mxu0 0.0
      %1403 = vmatprep.subr.mxu0 0.0
      %1404 = vmatpush1.msra.mxu0 0.0
      %1405 = vmatprep.subr.mxu0 0.0
      %1406 = vmatpush1.msra.mxu0 0.0
      %1407 = vmatprep.subr.mxu0 0.0
      %1408 = vmatpush1.msra.mxu0 0.0
      %1409 = vmatprep.subr.mxu0 0.0
      %1410 = vmatpush1.msra.mxu0 0.0
      %1411 = vmatprep.subr.mxu0 0.0
      %1412 = vmatpush1.msra.mxu0 0.0
      %1413 = vmatprep.subr.mxu0 0.0
      %1414 = vmatpush1.msra.mxu0 0.0
      %1415 = vmatprep.subr.mxu0 0.0
      %1416 = vmatpush1.msra.mxu0 0.0
      %1417 = vmatprep.subr.mxu0 0.0
      %1418 = vmatpush1.msra.mxu0 0.0
      %1419 = vmatprep.subr.mxu0 0.0
      %1420 = vmatpush1.msra.mxu0 0.0
      %1421 = vmatprep.subr.mxu0 0.0
      %1422 = vmatpush1.msra.mxu0 0.0
      %1423 = vmatprep.mubr.f32.mxu0 0.0
      %1424 = vmatmul.mubr.f32.gmra.mrb[0].mxu0 %v1317
      %v1425 = vpop.f32.mrb[0].mxu0
      %v1426 = vadd.f32 %v1357, %v1425
      %v1427 = vpop.f32.mrb[0].mxu0
      %1428 = vmatprep.mubr.f32.mxu0 0.0
      %1429 = vmatmul.mubr.f32.gmra.mrb[0].mxu0 %v1318
      %v1430 = vpop.f32.mrb[0].mxu0
      %v1431 = vadd.f32 %v1357, %v1430
      %v1432 = vpop.f32.mrb[0].mxu0
      %1433 = vmatprep.mubr.f32.mxu0 0.0
      %1434 = vmatmul.mubr.f32.gmra.mrb[0].mxu0 %v1319
      %v1435 = vpop.f32.mrb[0].mxu0
      %v1436 = vadd.f32 %v1357, %v1435
      %v1437 = vpop.f32.mrb[0].mxu0
      %1438 = vmatprep.mubr.f32.mxu0 0.0
      %1439 = vmatmul.mubr.f32.gmra.mrb[0].mxu0 %v1320
      %v1440 = vpop.f32.mrb[0].mxu0
      %v1441 = vadd.f32 %v1357, %v1440
      %v1442 = vpop.f32.mrb[0].mxu0
      %1443 = vmatprep.mubr.f32.mxu0 0.0
      %1444 = vmatmul.mubr.f32.gmra.mrb[0].mxu0 %v1321
      %v1445 = vpop.f32.mrb[0].mxu0
      %v1446 = vadd.f32 %v1357, %v1445
      %v1447 = vpop.f32.mrb[0].mxu0
      %1448 = vmatprep.mubr.f32.mxu0 0.0
      %1449 = vmatmul.mubr.f32.gmra.mrb[0].mxu0 %v1322
      %v1450 = vpop.f32.mrb[0].mxu0
      %v1451 = vadd.f32 %v1357, %v1450
      %v1452 = vpop.f32.mrb[0].mxu0
      %1453 = vmatprep.mubr.f32.mxu0 0.0
      %1454 = vmatmul.mubr.f32.gmra.mrb[0].mxu0 %v1323
      %v1455 = vpop.f32.mrb[0].mxu0
      %v1456 = vadd.f32 %v1357, %v1455
      %v1457 = vpop.f32.mrb[0].mxu0
      %1458 = vmatprep.mubr.f32.mxu0 0.0
      %1459 = vmatmul.mubr.f32.gmra.mrb[0].mxu0 %v1324
      %v1460 = vpop.f32.mrb[0].mxu0
      %v1461 = vadd.f32 %v1357, %v1460
      %v1462 = vpop.f32.mrb[0].mxu0
      %1463 = vmatprep.mubr.f32.mxu0 0.0
      %1464 = vmatmul.mubr.f32.gmra.mrb[0].mxu0 %v1325
      %v1465 = vpop.f32.mrb[0].mxu0
      %v1466 = vadd.f32 %v1357, %v1465
      %v1467 = vpop.f32.mrb[0].mxu0
      %1468 = vmatprep.mubr.f32.mxu0 0.0
      %1469 = vmatmul.mubr.f32.gmra.mrb[0].mxu0 %v1326
      %v1470 = vpop.f32.mrb[0].mxu0
      %v1471 = vadd.f32 %v1357, %v1470
      %v1472 = vpop.f32.mrb[0].mxu0
      %1473 = vmatprep.mubr.f32.mxu0 0.0
      %1474 = vmatmul.mubr.f32.gmra.mrb[0].mxu0 %v1327
      %v1475 = vpop.f32.mrb[0].mxu0
      %v1476 = vadd.f32 %v1357, %v1475
      %v1477 = vpop.f32.mrb[0].mxu0
      %1478 = vmatprep.mubr.f32.mxu0 0.0
      %1479 = vmatmul.mubr.f32.gmra.mrb[0].mxu0 %v1328
      %v1480 = vpop.f32.mrb[0].mxu0
      %v1481 = vadd.f32 %v1357, %v1480
      %v1482 = vpop.f32.mrb[0].mxu0
      %1483 = vmatprep.mubr.f32.mxu0 0.0
      %1484 = vmatmul.mubr.f32.gmra.mrb[0].mxu0 %v1329
      %v1485 = vpop.f32.mrb[0].mxu0
      %v1486 = vadd.f32 %v1357, %v1485
      %v1487 = vpop.f32.mrb[0].mxu0
      %1488 = vmatprep.mubr.f32.mxu0 0.0
      %1489 = vmatmul.mubr.f32.gmra.mrb[0].mxu0 %v1330
      %v1490 = vpop.f32.mrb[0].mxu0
      %v1491 = vadd.f32 %v1357, %v1490
      %v1492 = vpop.f32.mrb[0].mxu0
      %1493 = vmatprep.mubr.f32.mxu0 0.0
      %1494 = vmatmul.mubr.f32.gmra.mrb[0].mxu0 %v1331
      %v1495 = vpop.f32.mrb[0].mxu0
      %v1496 = vadd.f32 %v1357, %v1495
      %v1497 = vpop.f32.mrb[0].mxu0
      %1498 = vmatprep.mubr.f32.mxu0 0.0
      %1499 = vmatmul.mubr.f32.gmra.mrb[0].mxu0 %v1332
      %v1500 = vpop.f32.mrb[0].mxu0
      %v1501 = vadd.f32 %v1357, %v1500
      %v1502 = vpop.f32.mrb[0].mxu0
      %1503 = vmatprep.mubr.f32.mxu0 0.0
      %1504 = vmatmul.mubr.f32.gmra.mrb[0].mxu0 %v1333
      %v1505 = vpop.f32.mrb[0].mxu0
      %v1506 = vadd.f32 %v1357, %v1505
      %v1507 = vpop.f32.mrb[0].mxu0
      %1508 = vmatprep.mubr.f32.mxu0 0.0
      %1509 = vmatmul.mubr.f32.gmra.mrb[0].mxu0 %v1334
      %v1510 = vpop.f32.mrb[0].mxu0
      %v1511 = vadd.f32 %v1357, %v1510
      %v1512 = vpop.f32.mrb[0].mxu0
      %1513 = vmatprep.mubr.f32.mxu0 0.0
      %1514 = vmatmul.mubr.f32.gmra.mrb[0].mxu0 %v1335
      %v1515 = vpop.f32.mrb[0].mxu0
      %v1516 = vadd.f32 %v1357, %v1515
      %v1517 = vpop.f32.mrb[0].mxu0
      %1518 = vdwg.mxu0
      %vm1519 = vcmask 64512
      %1520 = vst.msk [vmem:[%s388] sm:$0xff] %vm1519, %v1426
      %1521 = vst.msk [vmem:[%s388 + $0x8] sm:$0xff] %vm1519, %v1431
      %1522 = vst.msk [vmem:[%s388 + $0x10] sm:$0xff] %vm1519, %v1436
      %1523 = vst.msk [vmem:[%s388 + $0x18] sm:$0xff] %vm1519, %v1441
      %1524 = vst.msk [vmem:[%s388 + $0x20] sm:$0xff] %vm1519, %v1446
      %1525 = vst.msk [vmem:[%s388 + $0x28] sm:$0xff] %vm1519, %v1451
      %1526 = vst.msk [vmem:[%s388 + $0x30] sm:$0xff] %vm1519, %v1456
      %1527 = vst.msk [vmem:[%s388 + $0x38] sm:$0xff] %vm1519, %v1461
      %1528 = vst.msk [vmem:[%s388 + $0x40] sm:$0xff] %vm1519, %v1466
      %1529 = vst.msk [vmem:[%s388 + $0x48] sm:$0xff] %vm1519, %v1471
      %1530 = vst.msk [vmem:[%s388 + $0x50] sm:$0xff] %vm1519, %v1476
      %1531 = vst.msk [vmem:[%s388 + $0x58] sm:$0xff] %vm1519, %v1481
      %1532 = vst.msk [vmem:[%s388 + $0x60] sm:$0xff] %vm1519, %v1486
      %1533 = vst.msk [vmem:[%s388 + $0x68] sm:$0xff] %vm1519, %v1491
      %1534 = vst.msk [vmem:[%s388 + $0x70] sm:$0xff] %vm1519, %v1496
      %1535 = vst.msk [vmem:[%s388 + $0x78] sm:$0xff] %vm1519, %v1501
      %1536 = vst.msk [vmem:[%s388 + $0x80] sm:$0xff] %vm1519, %v1506
      %1537 = vst.msk [vmem:[%s388 + $0x88] sm:$0xff] %vm1519, %v1511
      %1538 = vst.msk [vmem:[%s388 + $0x90] sm:$0xff] %vm1519, %v1516
      %s1539 = smul.u32 19, %s22
      %p1540 = scmp.lt.s32.totalorder %s1539, 37
      %s1541 = scalar_select %p1540, %s1539, 37
      %s1542 = smul.addr %s1541, 8
      %s1543 = scalar_lea.vmem %s11, %s1542
      // Predicated region
      $region65: #{dqn_forward.1} parent=63 // pred_check
        %p1544 = pneg %p276
      $region66: #{dqn_forward.1} parent=63 // pred_check_branch
        %1546 = sbr.rel (%p1544) target = $region68
      $region67: #{dqn_forward.1} parent=63 // pred_region
        %s1547 = smul.u32 19, %s22
      $region68: #{dqn_forward.1} parent=63 // pred_fallthru
        _
    $region64: #{dqn_forward.1} parent=5 // pred_fallthru
      _
    %p1548 = scmp.le.s32.totalorder 2, %s17
    // Predicated region
    $region69: #{dqn_forward.1} parent=5 // pred_check
      %p1549 = pneg %p1548
    $region70: #{dqn_forward.1} parent=5 // pred_check_branch
      %1551 = sbr.rel (%p1549) target = $region72
    $region71: #{dqn_forward.1} parent=5 // pred_region
      %s1552 = ssub.s32 %s17, 2
      // Predicated region
      $region73: #{dqn_forward.1} parent=71 // pred_check
        %p1553 = pneg %p282
      $region74: #{dqn_forward.1} parent=71 // pred_check_branch
        %1555 = sbr.rel (%p1553) target = $region76
      $region75: #{dqn_forward.1} parent=71 // pred_region
        %s1556 = smul.u32 19, %s23
        %p1557 = scmp.lt.s32.totalorder %s1556, 37
        %s1558 = scalar_select %p1557, %s1556, 37
        %s1559 = smul.addr %s1558, 8
        %s1560 = scalar_lea.vmem %s11, %s1559
      $region76: #{dqn_forward.1} parent=71 // pred_fallthru
        _
    $region72: #{dqn_forward.1} parent=5 // pred_fallthru
      _
  $region6: #{dqn_forward.1} parent=0 // loop_footer
    %s21 = sadd.s32 1, %s17
  $region7: #{dqn_forward.1} parent=0 // loop_footer_branch
    %16 = sbr.rel target = $region3
  $region8: #{dqn_forward.1} parent=0 // loop_exit
    _

</llo_original>
